<compile_context>
chip_gen: v7x
topology: tpu7x:2x2x1
jax: 0.10.0
libtpu: 0.0.40
codegen_flags: <defaults>
</compile_context>

<pallas_src>
import math
from functools import partial

import numpy as np
import jax
import jax.numpy as jnp
from jax import lax
from jax.experimental import pallas as pl
from jax.experimental.pallas import tpu as pltpu

BF16 = jnp.bfloat16
F32 = jnp.float32


def _round_up(x, m):
    return (x + m - 1) // m * m


def _elu(x):
    # F.elu, alpha=1 (exp of the positive branch is discarded by the select; no NaNs)
    return jnp.where(x > 0.0, x, jnp.exp(x) - 1.0)


def _ones_col_mask(shape, col):
    return lax.broadcasted_iota(jnp.int32, shape, 1) == col


def _masked_exp(adj_ref, a_dst, a_src):
    """Unnormalized attention tile: adj * exp(0.5 * tanh(a_dst_half + a_src_half)), in bf16.

    a_dst/a_src are pre-scaled by 0.5 in prep, so sigmoid(e) = 0.5 + 0.5*tanh(e/2) reduces to
    0.5*tanh(.) plus a constant; exp(const) cancels in the row softmax and is dropped.  The
    row normalization itself is folded into the aggregation matmul via a ones column.
    """
    e = a_dst + a_src                                        # (Tm,1)+(1,Tk) VPU broadcast-add
    return (adj_ref[...].astype(F32) * jnp.exp(0.5 * jnp.tanh(e))).astype(BF16)


def _row_inv(s, ones_col):
    """1/row-denominator read from the ones column of the aggregated result (isolated-node safe)."""
    den = s[:, ones_col:ones_col + 1]
    return jnp.where(den > 0.0, pl.reciprocal(den, approx=True), 0.0)


# --------------------------------------------------------------------------------------------
# Kernels
# --------------------------------------------------------------------------------------------

def prep_kernel(feat_ref, w1_ref, asrc_ref, adst_ref, x1_ref, a_src_ref, a_dst_ref, *, ones_col):
    """conv1 linear transform for one row tile + pre-scaled per-node attention logits."""
    x1 = jnp.dot(feat_ref[...], w1_ref[...], preferred_element_type=F32)          # (Tm, Hp) f32
    # lane-dense (1, Tm) source logits via a K=Hp contraction (no rank-1 outer product)
    a_src_ref[...] = 0.5 * lax.dot_general(asrc_ref[...], x1, (((1,), (1,)), ((), ())),
                                           preferred_element_type=F32)            # (1, Tm)
    a_dst_ref[...] = 0.5 * jnp.sum(x1 * adst_ref[...], axis=-1, keepdims=True)    # (Tm, 1)
    # ones column at `ones_col` (inside the zero-padded lanes) folds the softmax denominator
    # into the aggregation matmul downstream.
    x1_ref[...] = jnp.where(_ones_col_mask(x1.shape, ones_col), 1.0, x1).astype(BF16)


def pass_a_kernel(adj_ref, a_dst_ref, a_src_ref, x1_ref, w2_ref, w2t_ref,
                  h2_ref, x3_ref, acc_ref, *, ones_col):
    """conv1 K-chunked masked-softmax aggregation + ELU, conv2 linear, and x3 = h2 @ W2^T."""
    k = pl.program_id(1)

    @pl.when(k == 0)
    def _():
        acc_ref[...] = jnp.zeros_like(acc_ref)

    num = _masked_exp(adj_ref, a_dst_ref[...], a_src_ref[...])                     # (Tm, Tk) bf16
    acc_ref[...] += jnp.dot(num, x1_ref[...], preferred_element_type=F32)          # (Tm, Hp) f32

    @pl.when(k == pl.num_programs(1) - 1)
    def _():
        s = acc_ref[...]
        h1 = _elu(s * _row_inv(s, ones_col))
        h2 = jnp.dot(h1.astype(BF16), w2_ref[...], preferred_element_type=F32)     # (Tm, Op)
        h2_ref[...] = h2
        x3 = jnp.dot(h2.astype(BF16), w2t_ref[...], preferred_element_type=F32)    # (Tm, Hp)
        x3_ref[...] = jnp.where(_ones_col_mask(x3.shape, ones_col), 1.0, x3).astype(BF16)


def pass_b_kernel(adj_ref, a_dst_ref, a_src_ref, x3_ref, w1t_ref,
                  h4_ref, acc_ref, *, ones_col):
    """conv3 K-chunked aggregation with tied attention + ELU, then conv4 linear (W1^T)."""
    k = pl.program_id(1)

    @pl.when(k == 0)
    def _():
        acc_ref[...] = jnp.zeros_like(acc_ref)

    num = _masked_exp(adj_ref, a_dst_ref[...], a_src_ref[...])
    acc_ref[...] += jnp.dot(num, x3_ref[...], preferred_element_type=F32)

    @pl.when(k == pl.num_programs(1) - 1)
    def _():
        s = acc_ref[...]
        h3 = _elu(s * _row_inv(s, ones_col))
        h4_ref[...] = jnp.dot(h3.astype(BF16), w1t_ref[...], preferred_element_type=F32)


def fused_kernel(feat_ref, adj_ref, w1_ref, w2_ref, w2t_ref, w1t_ref, asrc_ref, adst_ref,
                 h2_ref, h4_ref, *, ones_col):
    """Whole forward in one call for small graphs; attention tile + denominator reused for conv3."""
    x1 = jnp.dot(feat_ref[...], w1_ref[...], preferred_element_type=F32)           # (N, Hp)
    a_src = 0.5 * lax.dot_general(asrc_ref[...], x1, (((1,), (1,)), ((), ())),
                                  preferred_element_type=F32)                      # (1, N)
    a_dst = 0.5 * jnp.sum(x1 * adst_ref[...], axis=-1, keepdims=True)              # (N, 1)
    mask = _ones_col_mask(x1.shape, ones_col)
    x1_aug = jnp.where(mask, 1.0, x1).astype(BF16)

    num = _masked_exp(adj_ref, a_dst, a_src)                                       # (N, N) bf16
    s = jnp.dot(num, x1_aug, preferred_element_type=F32)
    inv = _row_inv(s, ones_col)
    h1 = _elu(s * inv)
    h2 = jnp.dot(h1.astype(BF16), w2_ref[...], preferred_element_type=F32)
    h2_ref[...] = h2

    x3 = jnp.dot(h2.astype(BF16), w2t_ref[...], preferred_element_type=F32)
    x3_aug = jnp.where(mask, 1.0, x3).astype(BF16)
    s3 = jnp.dot(num, x3_aug, preferred_element_type=F32)
    h3 = _elu(s3 * inv)            # ones column gives the same denominator -> reuse inv
    h4_ref[...] = jnp.dot(h3.astype(BF16), w1t_ref[...], preferred_element_type=F32)


# --------------------------------------------------------------------------------------------
# Wrapper
# --------------------------------------------------------------------------------------------

def _vmem_limit(need_bytes):
    """Scoped-VMEM budget from the device capacity (headroom kept), not a hard-coded 64 MiB."""
    cap = 64 * 2 ** 20
    try:
        cap = int(getattr(pltpu.get_tpu_info(), "vmem_capacity_bytes", cap))
    except Exception:
        pass
    return int(min(int(0.85 * cap), max(24 * 2 ** 20, int(1.5 * need_bytes))))


def _pad2(a, shape, dtype):
    return jnp.zeros(shape, dtype).at[:a.shape[0], :a.shape[1]].set(a.astype(dtype))


def stahd_forward(features, adj, w1, w2, att_src, att_dst, *,
                  tile_m=256, tile_k=512, fuse_max_nodes=1024):
    n, din = features.shape
    h = w1.shape[1]
    dout = w2.shape[1]

    # Lane (last) dims zero-padded to 128 -> unmasked full-lane stores, dense MXU columns.
    # H gets one spare lane (the "ones column") so the softmax denominator rides the matmul.
    din_p = _round_up(din, 128)
    dout_p = _round_up(dout, 128)
    h_p = _round_up(h + 1, 128)
    ones_col = h

    fuse = _round_up(n, 128) <= fuse_max_nodes
    if fuse:
        n_pad = _round_up(n, 128)
    else:
        tm = _round_up(min(tile_m, _round_up(n, 32)), 32)     # int8 sublane packing
        tk = _round_up(min(tile_k, _round_up(n, 128)), 128)   # lane granularity
        n_pad = _round_up(n, tm * tk // math.gcd(tm, tk))

    feat_p = _pad2(features, (n_pad, din_p), BF16)
    adj_p = _pad2(adj != 0, (n_pad, n_pad), jnp.int8)          # bit-mask streamed as int8
    w1_p = _pad2(w1, (din_p, h_p), BF16)
    w2_p = _pad2(w2, (h_p, dout_p), BF16)
    w1t_p = jnp.transpose(w1_p)                                # (h_p, din_p), rows >= h are zero
    w2t_p = jnp.transpose(w2_p)                                # (dout_p, h_p), cols >= h are zero
    asrc_p = _pad2(att_src, (1, h_p), F32)
    adst_p = _pad2(att_dst, (1, h_p), F32)

    if fuse:
        # Single-call path: launch/pipeline overhead dominates at this size and the attention
        # tile + denominator are reused for conv3 (no second tanh/exp sweep).
        full = lambda shp: pl.BlockSpec(shp, lambda i: (0, 0))
        need = n_pad * n_pad * (2 + 5 * 4 + 2) + n_pad * (h_p * 16 + (din_p + dout_p) * 8)
        h2_p, h4_p = pl.pallas_call(
            partial(fused_kernel, ones_col=ones_col),
            out_shape=(jax.ShapeDtypeStruct((n_pad, dout_p), F32),
                       jax.ShapeDtypeStruct((n_pad, din_p), F32)),
            grid=(1,),
            in_specs=[full((n_pad, din_p)), full((n_pad, n_pad)), full((din_p, h_p)),
                      full((h_p, dout_p)), full((dout_p, h_p)), full((h_p, din_p)),
                      full((1, h_p)), full((1, h_p))],
            out_specs=(full((n_pad, dout_p)), full((n_pad, din_p))),
            compiler_params=pltpu.CompilerParams(
                dimension_semantics=("arbitrary",),
                vmem_limit_bytes=_vmem_limit(need)),
            cost_estimate=pl.CostEstimate(
                flops=2 * n_pad * (din_p * h_p + 2 * n_pad * h_p + 2 * h_p * dout_p + h_p * din_p),
                transcendentals=2 * n_pad * n_pad + 2 * n_pad * h_p,
                bytes_accessed=n_pad * n_pad + n_pad * (din_p * 6 + dout_p * 4)),
        )(feat_p, adj_p, w1_p, w2_p, w2t_p, w1t_p, asrc_p, adst_p)
        return h2_p[:n, :dout], h4_p[:n, :din]

    grid_m, grid_k = n_pad // tm, n_pad // tk

    # ---- pass 0 (prep): x1 = feat @ W1 (+ ones column), pre-scaled attention logits ----
    x1_aug, a_src_row, a_dst_col = pl.pallas_call(
        partial(prep_kernel, ones_col=ones_col),
        out_shape=(jax.ShapeDtypeStruct((n_pad, h_p), BF16),   # x1 values (+ ones column)
                   jax.ShapeDtypeStruct((1, n_pad), F32),      # a_src, lane-dense row
                   jax.ShapeDtypeStruct((n_pad, 1), F32)),     # a_dst column (O(N) bytes)
        grid=(grid_m,),
        in_specs=[pl.BlockSpec((tm, din_p), lambda i: (i, 0)),
                  pl.BlockSpec((din_p, h_p), lambda i: (0, 0)),
                  pl.BlockSpec((1, h_p), lambda i: (0, 0)),
                  pl.BlockSpec((1, h_p), lambda i: (0, 0))],
        out_specs=(pl.BlockSpec((tm, h_p), lambda i: (i, 0)),
                   pl.BlockSpec((1, tm), lambda i: (0, i)),
                   pl.BlockSpec((tm, 1), lambda i: (i, 0))),
        compiler_params=pltpu.CompilerParams(
            dimension_semantics=("parallel",),
            vmem_limit_bytes=_vmem_limit(4 * tm * (din_p + 2 * h_p) + 2 * din_p * h_p)),
    )(feat_p, w1_p, asrc_p, adst_p)

    # ---- pass A: conv1 aggregation (K-chunked, denom via ones column) + ELU, conv2, x3 ----
    a_need = tm * tk * (2 + 4 * 4 + 2) + 2 * tk * h_p * 2 + tm * (h_p * 12 + dout_p * 8)
    h2_p, x3_aug = pl.pallas_call(
        partial(pass_a_kernel, ones_col=ones_col),
        out_shape=(jax.ShapeDtypeStruct((n_pad, dout_p), F32),
                   jax.ShapeDtypeStruct((n_pad, h_p), BF16)),
        grid=(grid_m, grid_k),
        in_specs=[pl.BlockSpec((tm, tk), lambda i, k: (i, k)),       # adj int8 tile, streamed
                  pl.BlockSpec((tm, 1), lambda i, k: (i, 0)),        # a_dst (pre-scaled)
                  pl.BlockSpec((1, tk), lambda i, k: (0, k)),        # a_src (pre-scaled)
                  pl.BlockSpec((tk, h_p), lambda i, k: (k, 0)),      # x1 chunk (bf16, +ones col)
                  pl.BlockSpec((h_p, dout_p), lambda i, k: (0, 0)),  # W2
                  pl.BlockSpec((dout_p, h_p), lambda i, k: (0, 0))], # W2^T
        out_specs=(pl.BlockSpec((tm, dout_p), lambda i, k: (i, 0)),
                   pl.BlockSpec((tm, h_p), lambda i, k: (i, 0))),
        scratch_shapes=[pltpu.VMEM((tm, h_p), F32)],
        compiler_params=pltpu.CompilerParams(
            dimension_semantics=("parallel", "arbitrary"),
            vmem_limit_bytes=_vmem_limit(a_need)),
        cost_estimate=pl.CostEstimate(
            flops=2 * n_pad * n_pad * h_p + 4 * n_pad * h_p * dout_p,
            transcendentals=2 * n_pad * n_pad + n_pad * h_p,
            bytes_accessed=n_pad * n_pad + grid_m * n_pad * h_p * 2
                           + n_pad * (dout_p * 4 + h_p * 2)),
    )(adj_p, a_dst_col, a_src_row, x1_aug, w2_p, w2t_p)

    # ---- pass B: conv3 aggregation (tied attention, recomputed) + ELU, conv4 linear ----
    b_need = tm * tk * (2 + 4 * 4 + 2) + 2 * tk * h_p * 2 + tm * (h_p * 8 + din_p * 8)
    h4_p = pl.pallas_call(
        partial(pass_b_kernel, ones_col=ones_col),
        out_shape=jax.ShapeDtypeStruct((n_pad, din_p), F32),
        grid=(grid_m, grid_k),
        in_specs=[pl.BlockSpec((tm, tk), lambda i, k: (i, k)),
                  pl.BlockSpec((tm, 1), lambda i, k: (i, 0)),
                  pl.BlockSpec((1, tk), lambda i, k: (0, k)),
                  pl.BlockSpec((tk, h_p), lambda i, k: (k, 0)),      # x3 chunk (bf16, +ones col)
                  pl.BlockSpec((h_p, din_p), lambda i, k: (0, 0))],  # W1^T
        out_specs=pl.BlockSpec((tm, din_p), lambda i, k: (i, 0)),
        scratch_shapes=[pltpu.VMEM((tm, h_p), F32)],
        compiler_params=pltpu.CompilerParams(
            dimension_semantics=("parallel", "arbitrary"),
            vmem_limit_bytes=_vmem_limit(b_need)),
        cost_estimate=pl.CostEstimate(
            flops=2 * n_pad * n_pad * h_p + 2 * n_pad * h_p * din_p,
            transcendentals=2 * n_pad * n_pad + n_pad * h_p,
            bytes_accessed=n_pad * n_pad + grid_m * n_pad * h_p * 2 + n_pad * din_p * 4),
    )(adj_p, a_dst_col, a_src_row, x3_aug, w1t_p)

    # TODO(synk): for large sparse real-world graphs, replace the dense adjacency stream with a
    # CSR/neighbor-list formulation via PrefetchScalarGridSpec (O(E) instead of O(N^2)).
    return h2_p[:n, :dout], h4_p[:n, :din]


def stahd_reference(features, adj, w1, w2, att_src, att_dst):
    """Pure-JAX f32 reference mirroring the PyTorch module."""
    x1 = features @ w1
    a_src = jnp.sum(x1 * att_src, axis=-1, keepdims=True)
    a_dst = jnp.sum(x1 * att_dst, axis=-1, keepdims=True)
    e = a_dst + a_src.T
    sig = jax.nn.sigmoid(e)
    num = adj * jnp.exp(sig)
    den = jnp.sum(num, axis=-1, keepdims=True)
    p = num * jnp.where(den > 0.0, 1.0 / den, 0.0)
    h1 = jax.nn.elu(p @ x1)
    h2 = h1 @ w2
    h3 = jax.nn.elu(p @ (h2 @ w2.T))
    h4 = h3 @ w1.T
    return h2, h4


if __name__ == "__main__":
    # hidden_dims = [in_dim, num_hidden, out_dim]
    N, in_dim, num_hidden, out_dim = 64, 16, 32, 8

    key = jax.random.PRNGKey(0)
    k1, k2, k3, k4, k5 = jax.random.split(key, 5)
    features = jax.random.normal(k1, (N, in_dim), jnp.float32)
    # GATConv parameters (xavier-normal-like deterministic init; shapes from __init__)
    w1 = jax.random.normal(k2, (in_dim, num_hidden), jnp.float32) * (1.414 / np.sqrt(in_dim))
    w2 = jax.random.normal(k3, (num_hidden, out_dim), jnp.float32) * (1.414 / np.sqrt(num_hidden))
    att_src = jax.random.normal(k4, (1, num_hidden), jnp.float32) * 0.5   # conv1.att_src (heads=1)
    att_dst = jax.random.normal(k5, (1, num_hidden), jnp.float32) * 0.5   # conv1.att_dst (heads=1)

    # Deterministic directed graph: edges (i+d) % N -> i for d in {0,1,2}
    src, dst = [], []
    for i in range(N):
        for d in (0, 1, 2):
            src.append((i + d) % N)
            dst.append(i)
    edge_index = jnp.asarray(np.stack([src, dst]), dtype=jnp.int32)       # (2, E), PyG layout

    # Dense adjacency mask adj[dst, src] = 1.0 (glue, outside the kernels)
    adj = jnp.zeros((N, N), jnp.float32).at[edge_index[1], edge_index[0]].set(1.0)

    h2, h4 = jax.jit(stahd_forward)(features, adj, w1, w2, att_src, att_dst)
    jax.block_until_ready((h2, h4))

    h2_ref, h4_ref = stahd_reference(features, adj, w1, w2, att_src, att_dst)
    assert h2.shape == (N, out_dim) and h4.shape == (N, in_dim)
    # bf16 MXU operands with f32 accumulation -> a few-percent relative tolerance vs f32 ref
    assert jnp.allclose(h2, h2_ref, atol=5e-2, rtol=5e-2)
    assert jnp.allclose(h4, h4_ref, atol=5e-2, rtol=5e-2)

    print("KERNEL_OK")
</pallas_src>

<mosaic_0001>
module attributes {stable_mosaic.version = 11 : i64} {
  func.func @fused_kernel(%arg0: i32, %arg1: memref<128x128xbf16, #tpu.memory_space<vmem>>, %arg2: memref<128x128xi8, #tpu.memory_space<vmem>>, %arg3: memref<128x128xbf16, #tpu.memory_space<vmem>>, %arg4: memref<128x128xbf16, #tpu.memory_space<vmem>>, %arg5: memref<128x128xbf16, #tpu.memory_space<vmem>>, %arg6: memref<128x128xbf16, #tpu.memory_space<vmem>>, %arg7: memref<1x128xf32, #tpu.memory_space<vmem>>, %arg8: memref<1x128xf32, #tpu.memory_space<vmem>>, %arg9: memref<128x128xf32, #tpu.memory_space<vmem>>, %arg10: memref<128x128xf32, #tpu.memory_space<vmem>>) attributes {dimension_semantics = [#tpu.dimension_semantics<arbitrary>], iteration_bounds = array<i64: 1>, scalar_prefetch = 0 : i64, scratch_operands = 0 : i64, tpu.core_type = #tpu.core_type<tc>, window_params = [{pipeline_mode = #tpu.pipeline_mode<synchronous>, transform_indices = @transform_0, window_bounds = array<i64: 128, 128>}, {pipeline_mode = #tpu.pipeline_mode<synchronous>, transform_indices = @transform_1, window_bounds = array<i64: 128, 128>}, {pipeline_mode = #tpu.pipeline_mode<synchronous>, transform_indices = @transform_2, window_bounds = array<i64: 128, 128>}, {pipeline_mode = #tpu.pipeline_mode<synchronous>, transform_indices = @transform_3, window_bounds = array<i64: 128, 128>}, {pipeline_mode = #tpu.pipeline_mode<synchronous>, transform_indices = @transform_4, window_bounds = array<i64: 128, 128>}, {pipeline_mode = #tpu.pipeline_mode<synchronous>, transform_indices = @transform_5, window_bounds = array<i64: 128, 128>}, {pipeline_mode = #tpu.pipeline_mode<synchronous>, transform_indices = @transform_6, window_bounds = array<i64: 1, 128>}, {pipeline_mode = #tpu.pipeline_mode<synchronous>, transform_indices = @transform_7, window_bounds = array<i64: 1, 128>}, {pipeline_mode = #tpu.pipeline_mode<synchronous>, transform_indices = @transform_8, window_bounds = array<i64: 128, 128>}, {pipeline_mode = #tpu.pipeline_mode<synchronous>, transform_indices = @transform_9, window_bounds = array<i64: 128, 128>}]} {
    %c0 = arith.constant 0 : index
    %c0_0 = arith.constant 0 : index
    %0 = vector.load %arg1[%c0, %c0_0] : memref<128x128xbf16, #tpu.memory_space<vmem>>, vector<128x128xbf16>
    %c0_1 = arith.constant 0 : index
    %c0_2 = arith.constant 0 : index
    %1 = vector.load %arg3[%c0_1, %c0_2] : memref<128x128xbf16, #tpu.memory_space<vmem>>, vector<128x128xbf16>
    %cst = arith.constant dense<0.000000e+00> : vector<128x128xf32>
    %2 = tpu.matmul %0, %1, %cst {dimension_numbers = #tpu.dot_dimension_numbers<[1], [0], [0], [1], [0, 0, 1, 1], [], []>} : vector<128x128xbf16>, vector<128x128xbf16>, vector<128x128xf32> -> vector<128x128xf32>
    %c0_3 = arith.constant 0 : index
    %c0_4 = arith.constant 0 : index
    %3 = vector.load %arg7[%c0_3, %c0_4] : memref<1x128xf32, #tpu.memory_space<vmem>>, vector<1x128xf32>
    %cst_5 = arith.constant dense<0.000000e+00> : vector<1x128xf32>
    %4 = tpu.matmul %3, %2, %cst_5 {dimension_numbers = #tpu.dot_dimension_numbers<[1], [1], [0], [0], [0, 0, 1, 0], [], []>} : vector<1x128xf32>, vector<128x128xf32>, vector<1x128xf32> -> vector<1x128xf32>
    %cst_6 = arith.constant 5.000000e-01 : f32
    %5 = vector.broadcast %cst_6 : f32 to vector<1x128xf32>
    %6 = arith.mulf %5, %4 : vector<1x128xf32>
    %c0_7 = arith.constant 0 : index
    %c0_8 = arith.constant 0 : index
    %7 = vector.load %arg8[%c0_7, %c0_8] : memref<1x128xf32, #tpu.memory_space<vmem>>, vector<1x128xf32>
    %8 = vector.broadcast %7 : vector<1x128xf32> to vector<128x128xf32>
    %9 = arith.mulf %2, %8 : vector<128x128xf32>
    %cst_9 = arith.constant dense<0.000000e+00> : vector<128xf32>
    %10 = vector.multi_reduction <add>, %9, %cst_9 [1] : vector<128x128xf32> to vector<128xf32>
    %11 = vector.shape_cast %10 : vector<128xf32> to vector<128x1xf32>
    %cst_10 = arith.constant 5.000000e-01 : f32
    %12 = vector.broadcast %cst_10 : f32 to vector<128x1xf32>
    %13 = arith.mulf %12, %11 : vector<128x1xf32>
    %14 = tpu.iota {dimensions = array<i32: 1>} : vector<128x128xi32>
    %c32_i32 = arith.constant 32 : i32
    %15 = vector.broadcast %c32_i32 : i32 to vector<128x128xi32>
    %16 = arith.cmpi eq, %14, %15 : vector<128x128xi32>
    %cst_11 = arith.constant 1.000000e+00 : f32
    %17 = vector.broadcast %cst_11 : f32 to vector<128x128xf32>
    %18 = arith.select %16, %17, %2 : vector<128x128xi1>, vector<128x128xf32>
    %19 = arith.truncf %18 : vector<128x128xf32> to vector<128x128xbf16>
    %20 = vector.broadcast %13 : vector<128x1xf32> to vector<128x128xf32>
    %21 = vector.broadcast %6 : vector<1x128xf32> to vector<128x128xf32>
    %22 = arith.addf %20, %21 : vector<128x128xf32>
    %c0_12 = arith.constant 0 : index
    %c0_13 = arith.constant 0 : index
    %23 = vector.load %arg2[%c0_12, %c0_13] : memref<128x128xi8, #tpu.memory_space<vmem>>, vector<128x128xi8>
    %24 = arith.sitofp %23 : vector<128x128xi8> to vector<128x128xf32>
    %25 = math.tanh %22 : vector<128x128xf32>
    %cst_14 = arith.constant 5.000000e-01 : f32
    %26 = vector.broadcast %cst_14 : f32 to vector<128x128xf32>
    %27 = arith.mulf %26, %25 : vector<128x128xf32>
    %28 = math.exp %27 : vector<128x128xf32>
    %29 = arith.mulf %24, %28 : vector<128x128xf32>
    %30 = arith.truncf %29 : vector<128x128xf32> to vector<128x128xbf16>
    %cst_15 = arith.constant dense<0.000000e+00> : vector<128x128xf32>
    %31 = tpu.matmul %30, %19, %cst_15 {dimension_numbers = #tpu.dot_dimension_numbers<[1], [0], [0], [1], [0, 0, 1, 1], [], []>} : vector<128x128xbf16>, vector<128x128xbf16>, vector<128x128xf32> -> vector<128x128xf32>
    %32 = vector.extract_strided_slice %31 {offsets = [0, 32], sizes = [128, 1], strides = [1, 1]} : vector<128x128xf32> to vector<128x1xf32>
    %cst_16 = arith.constant 0.000000e+00 : f32
    %33 = vector.broadcast %cst_16 : f32 to vector<128x1xf32>
    %34 = arith.cmpf ogt, %32, %33 : vector<128x1xf32>
    %35 = tpu.reciprocal %32 {approx = true} : vector<128x1xf32> -> vector<128x1xf32>
    %cst_17 = arith.constant 0.000000e+00 : f32
    %36 = vector.broadcast %cst_17 : f32 to vector<128x1xf32>
    %37 = arith.select %34, %35, %36 : vector<128x1xi1>, vector<128x1xf32>
    %38 = vector.broadcast %37 : vector<128x1xf32> to vector<128x128xf32>
    %39 = arith.mulf %31, %38 : vector<128x128xf32>
    %cst_18 = arith.constant 0.000000e+00 : f32
    %40 = vector.broadcast %cst_18 : f32 to vector<128x128xf32>
    %41 = arith.cmpf ogt, %39, %40 : vector<128x128xf32>
    %42 = math.exp %39 : vector<128x128xf32>
    %cst_19 = arith.constant 1.000000e+00 : f32
    %43 = vector.broadcast %cst_19 : f32 to vector<128x128xf32>
    %44 = arith.subf %42, %43 : vector<128x128xf32>
    %45 = arith.select %41, %39, %44 : vector<128x128xi1>, vector<128x128xf32>
    %46 = arith.truncf %45 : vector<128x128xf32> to vector<128x128xbf16>
    %c0_20 = arith.constant 0 : index
    %c0_21 = arith.constant 0 : index
    %47 = vector.load %arg4[%c0_20, %c0_21] : memref<128x128xbf16, #tpu.memory_space<vmem>>, vector<128x128xbf16>
    %cst_22 = arith.constant dense<0.000000e+00> : vector<128x128xf32>
    %48 = tpu.matmul %46, %47, %cst_22 {dimension_numbers = #tpu.dot_dimension_numbers<[1], [0], [0], [1], [0, 0, 1, 1], [], []>} : vector<128x128xbf16>, vector<128x128xbf16>, vector<128x128xf32> -> vector<128x128xf32>
    %c0_23 = arith.constant 0 : index
    %c0_24 = arith.constant 0 : index
    %49 = vector.load %arg9[%c0_23, %c0_24] : memref<128x128xf32, #tpu.memory_space<vmem>>, vector<128x128xf32>
    tpu.vector_store %arg9[%c0_23, %c0_24], %48 {strides = array<i32>} : memref<128x128xf32, #tpu.memory_space<vmem>>, vector<128x128xf32>,
    %50 = arith.truncf %48 : vector<128x128xf32> to vector<128x128xbf16>
    %c0_25 = arith.constant 0 : index
    %c0_26 = arith.constant 0 : index
    %51 = vector.load %arg5[%c0_25, %c0_26] : memref<128x128xbf16, #tpu.memory_space<vmem>>, vector<128x128xbf16>
    %cst_27 = arith.constant dense<0.000000e+00> : vector<128x128xf32>
    %52 = tpu.matmul %50, %51, %cst_27 {dimension_numbers = #tpu.dot_dimension_numbers<[1], [0], [0], [1], [0, 0, 1, 1], [], []>} : vector<128x128xbf16>, vector<128x128xbf16>, vector<128x128xf32> -> vector<128x128xf32>
    %cst_28 = arith.constant 1.000000e+00 : f32
    %53 = vector.broadcast %cst_28 : f32 to vector<128x128xf32>
    %54 = arith.select %16, %53, %52 : vector<128x128xi1>, vector<128x128xf32>
    %55 = arith.truncf %54 : vector<128x128xf32> to vector<128x128xbf16>
    %cst_29 = arith.constant dense<0.000000e+00> : vector<128x128xf32>
    %56 = tpu.matmul %30, %55, %cst_29 {dimension_numbers = #tpu.dot_dimension_numbers<[1], [0], [0], [1], [0, 0, 1, 1], [], []>} : vector<128x128xbf16>, vector<128x128xbf16>, vector<128x128xf32> -> vector<128x128xf32>
    %57 = vector.broadcast %37 : vector<128x1xf32> to vector<128x128xf32>
    %58 = arith.mulf %56, %57 : vector<128x128xf32>
    %cst_30 = arith.constant 0.000000e+00 : f32
    %59 = vector.broadcast %cst_30 : f32 to vector<128x128xf32>
    %60 = arith.cmpf ogt, %58, %59 : vector<128x128xf32>
    %61 = math.exp %58 : vector<128x128xf32>
    %cst_31 = arith.constant 1.000000e+00 : f32
    %62 = vector.broadcast %cst_31 : f32 to vector<128x128xf32>
    %63 = arith.subf %61, %62 : vector<128x128xf32>
    %64 = arith.select %60, %58, %63 : vector<128x128xi1>, vector<128x128xf32>
    %65 = arith.truncf %64 : vector<128x128xf32> to vector<128x128xbf16>
    %c0_32 = arith.constant 0 : index
    %c0_33 = arith.constant 0 : index
    %66 = vector.load %arg6[%c0_32, %c0_33] : memref<128x128xbf16, #tpu.memory_space<vmem>>, vector<128x128xbf16>
    %cst_34 = arith.constant dense<0.000000e+00> : vector<128x128xf32>
    %67 = tpu.matmul %65, %66, %cst_34 {dimension_numbers = #tpu.dot_dimension_numbers<[1], [0], [0], [1], [0, 0, 1, 1], [], []>} : vector<128x128xbf16>, vector<128x128xbf16>, vector<128x128xf32> -> vector<128x128xf32>
    %c0_35 = arith.constant 0 : index
    %c0_36 = arith.constant 0 : index
    %68 = vector.load %arg10[%c0_35, %c0_36] : memref<128x128xf32, #tpu.memory_space<vmem>>, vector<128x128xf32>
    tpu.vector_store %arg10[%c0_35, %c0_36], %67 {strides = array<i32>} : memref<128x128xf32, #tpu.memory_space<vmem>>, vector<128x128xf32>,
    return
  }
  func.func @transform_0(%arg0: i32) -> (i32, i32) {
    %c0_i32 = arith.constant 0 : i32
    %c0_i32_0 = arith.constant 0 : i32
    %c0_i32_1 = arith.constant 0 : i32
    return %c0_i32, %c0_i32_0 : i32, i32
  }
  func.func @transform_1(%arg0: i32) -> (i32, i32) {
    %c0_i32 = arith.constant 0 : i32
    %c0_i32_0 = arith.constant 0 : i32
    %c0_i32_1 = arith.constant 0 : i32
    return %c0_i32, %c0_i32_0 : i32, i32
  }
  func.func @transform_2(%arg0: i32) -> (i32, i32) {
    %c0_i32 = arith.constant 0 : i32
    %c0_i32_0 = arith.constant 0 : i32
    %c0_i32_1 = arith.constant 0 : i32
    return %c0_i32, %c0_i32_0 : i32, i32
  }
  func.func @transform_3(%arg0: i32) -> (i32, i32) {
    %c0_i32 = arith.constant 0 : i32
    %c0_i32_0 = arith.constant 0 : i32
    %c0_i32_1 = arith.constant 0 : i32
    return %c0_i32, %c0_i32_0 : i32, i32
  }
  func.func @transform_4(%arg0: i32) -> (i32, i32) {
    %c0_i32 = arith.constant 0 : i32
    %c0_i32_0 = arith.constant 0 : i32
    %c0_i32_1 = arith.constant 0 : i32
    return %c0_i32, %c0_i32_0 : i32, i32
  }
  func.func @transform_5(%arg0: i32) -> (i32, i32) {
    %c0_i32 = arith.constant 0 : i32
    %c0_i32_0 = arith.constant 0 : i32
    %c0_i32_1 = arith.constant 0 : i32
    return %c0_i32, %c0_i32_0 : i32, i32
  }
  func.func @transform_6(%arg0: i32) -> (i32, i32) {
    %c0_i32 = arith.constant 0 : i32
    %c0_i32_0 = arith.constant 0 : i32
    %c0_i32_1 = arith.constant 0 : i32
    return %c0_i32, %c0_i32_0 : i32, i32
  }
  func.func @transform_7(%arg0: i32) -> (i32, i32) {
    %c0_i32 = arith.constant 0 : i32
    %c0_i32_0 = arith.constant 0 : i32
    %c0_i32_1 = arith.constant 0 : i32
    return %c0_i32, %c0_i32_0 : i32, i32
  }
  func.func @transform_8(%arg0: i32) -> (i32, i32) {
    %c0_i32 = arith.constant 0 : i32
    %c0_i32_0 = arith.constant 0 : i32
    %c0_i32_1 = arith.constant 0 : i32
    return %c0_i32, %c0_i32_0 : i32, i32
  }
  func.func @transform_9(%arg0: i32) -> (i32, i32) {
    %c0_i32 = arith.constant 0 : i32
    %c0_i32_0 = arith.constant 0 : i32
    %c0_i32_1 = arith.constant 0 : i32
    return %c0_i32, %c0_i32_0 : i32, i32
  }
}

</mosaic_0001>

<llo_original>
// kernel: stahd_forward.1
$region0: #{stahd_forward.1}
  #allocation0 [shape = 'u32[]', space=smem, size = 0x4, offset = 0x4, fixed_abs, tag = 'smem constant byte address 0x4 - core index']
  #allocation1 [shape = 'u32[144,128]{1,0:T(1,128)}', space=vmem, size = 0x12000, scoped, tag = 'internal scratch']
  %s0 = inlined_call_operand.vmem [shape: bf16[128,128], index: 0, kind: input, shape index: {}]
  %s1 = inlined_call_operand.vmem [shape: s8[128,128], index: 1, kind: input, shape index: {}]
  %s2 = inlined_call_operand.vmem [shape: bf16[128,128], index: 2, kind: input, shape index: {}]
  %s3 = inlined_call_operand.vmem [shape: bf16[128,128], index: 3, kind: input, shape index: {}]
  %s4 = inlined_call_operand.vmem [shape: bf16[128,128], index: 4, kind: input, shape index: {}]
  %s5 = inlined_call_operand.vmem [shape: bf16[128,128], index: 5, kind: input, shape index: {}]
  %s6 = inlined_call_operand.vmem [shape: f32[1,128], index: 6, kind: input, shape index: {}]
  %s7 = inlined_call_operand.vmem [shape: f32[1,128], index: 7, kind: input, shape index: {}]
  %s8 = inlined_call_operand.vmem [shape: f32[128,128], index: 8, kind: output, shape index: {0}]
  %s9 = inlined_call_operand.vmem [shape: f32[128,128], index: 9, kind: output, shape index: {1}]
  %10 = xla_tuple %s8, %s9
  %s11 = sld [smem:[#allocation0]]
  $region50: #{stahd_forward.1} parent=0
    _
  %s13 = ssub.s32 1, %s11
  %s14 = scalar_select 0, %s13, %s11
  // Predicated region
  $region2: #{stahd_forward.1} parent=0 // pred_check
    _
  $region3: #{stahd_forward.1} parent=0 // pred_check_branch
    %16 = sbr.rel (0) target = $region5
  $region4: #{stahd_forward.1} parent=0 // pred_region
    _
  $region5: #{stahd_forward.1} parent=0 // pred_fallthru
    _
  // Predicated region
  $region6: #{stahd_forward.1} parent=0 // pred_check
    _
  $region7: #{stahd_forward.1} parent=0 // pred_check_branch
    %18 = sbr.rel (0) target = $region9
  $region8: #{stahd_forward.1} parent=0 // pred_region
    _
  $region9: #{stahd_forward.1} parent=0 // pred_fallthru
    _
  // Predicated region
  $region10: #{stahd_forward.1} parent=0 // pred_check
    _
  $region11: #{stahd_forward.1} parent=0 // pred_check_branch
    %20 = sbr.rel (0) target = $region13
  $region12: #{stahd_forward.1} parent=0 // pred_region
    _
  $region13: #{stahd_forward.1} parent=0 // pred_fallthru
    _
  // Predicated region
  $region14: #{stahd_forward.1} parent=0 // pred_check
    _
  $region15: #{stahd_forward.1} parent=0 // pred_check_branch
    %22 = sbr.rel (0) target = $region17
  $region16: #{stahd_forward.1} parent=0 // pred_region
    _
  $region17: #{stahd_forward.1} parent=0 // pred_fallthru
    _
  // Predicated region
  $region18: #{stahd_forward.1} parent=0 // pred_check
    _
  $region19: #{stahd_forward.1} parent=0 // pred_check_branch
    %24 = sbr.rel (0) target = $region21
  $region20: #{stahd_forward.1} parent=0 // pred_region
    _
  $region21: #{stahd_forward.1} parent=0 // pred_fallthru
    _
  // Predicated region
  $region22: #{stahd_forward.1} parent=0 // pred_check
    _
  $region23: #{stahd_forward.1} parent=0 // pred_check_branch
    %26 = sbr.rel (0) target = $region25
  $region24: #{stahd_forward.1} parent=0 // pred_region
    _
  $region25: #{stahd_forward.1} parent=0 // pred_fallthru
    _
  // Predicated region
  $region26: #{stahd_forward.1} parent=0 // pred_check
    _
  $region27: #{stahd_forward.1} parent=0 // pred_check_branch
    %28 = sbr.rel (0) target = $region29
  $region28: #{stahd_forward.1} parent=0 // pred_region
    _
  $region29: #{stahd_forward.1} parent=0 // pred_fallthru
    _
  // Predicated region
  $region30: #{stahd_forward.1} parent=0 // pred_check
    _
  $region31: #{stahd_forward.1} parent=0 // pred_check_branch
    %30 = sbr.rel (0) target = $region33
  $region32: #{stahd_forward.1} parent=0 // pred_region
    _
  $region33: #{stahd_forward.1} parent=0 // pred_fallthru
    _
  %v32 = vld [vmem:[%s0] sm:$0xf]
  %v33 = vld [vmem:[%s0 + $0x4] sm:$0xf]
  %v34 = vld [vmem:[%s0 + $0x8] sm:$0xf]
  %v35 = vld [vmem:[%s0 + $0xc] sm:$0xf]
  %v36 = vld [vmem:[%s0 + $0x10] sm:$0xf]
  %v37 = vld [vmem:[%s0 + $0x14] sm:$0xf]
  %v38 = vld [vmem:[%s0 + $0x18] sm:$0xf]
  %v39 = vld [vmem:[%s0 + $0x1c] sm:$0xf]
  %v40 = vld [vmem:[%s0 + $0x20] sm:$0xf]
  %v41 = vld [vmem:[%s0 + $0x24] sm:$0xf]
  %v42 = vld [vmem:[%s0 + $0x28] sm:$0xf]
  %v43 = vld [vmem:[%s0 + $0x2c] sm:$0xf]
  %v44 = vld [vmem:[%s0 + $0x30] sm:$0xf]
  %v45 = vld [vmem:[%s0 + $0x34] sm:$0xf]
  %v46 = vld [vmem:[%s0 + $0x38] sm:$0xf]
  %v47 = vld [vmem:[%s0 + $0x3c] sm:$0xf]
  %v48 = vld [vmem:[%s2] sm:$0xf]
  %v49 = vld [vmem:[%s2 + $0x4] sm:$0xf]
  %v50 = vld [vmem:[%s2 + $0x8] sm:$0xf]
  %v51 = vld [vmem:[%s2 + $0xc] sm:$0xf]
  %v52 = vld [vmem:[%s2 + $0x10] sm:$0xf]
  %v53 = vld [vmem:[%s2 + $0x14] sm:$0xf]
  %v54 = vld [vmem:[%s2 + $0x18] sm:$0xf]
  %v55 = vld [vmem:[%s2 + $0x1c] sm:$0xf]
  %v56 = vld [vmem:[%s2 + $0x20] sm:$0xf]
  %v57 = vld [vmem:[%s2 + $0x24] sm:$0xf]
  %v58 = vld [vmem:[%s2 + $0x28] sm:$0xf]
  %v59 = vld [vmem:[%s2 + $0x2c] sm:$0xf]
  %v60 = vld [vmem:[%s2 + $0x30] sm:$0xf]
  %v61 = vld [vmem:[%s2 + $0x34] sm:$0xf]
  %v62 = vld [vmem:[%s2 + $0x38] sm:$0xf]
  %v63 = vld [vmem:[%s2 + $0x3c] sm:$0xf]
  %v80 = vunpack.c.l.b16 %v32
  %v81 = vunpack.c.l.b16 %v33
  %v82 = vunpack.c.l.b16 %v34
  %v83 = vunpack.c.l.b16 %v35
  %v84 = vunpack.c.l.b16 %v36
  %v85 = vunpack.c.l.b16 %v37
  %v86 = vunpack.c.l.b16 %v38
  %v87 = vunpack.c.l.b16 %v39
  %v88 = vunpack.c.l.b16 %v40
  %v89 = vunpack.c.l.b16 %v41
  %v90 = vunpack.c.l.b16 %v42
  %v91 = vunpack.c.l.b16 %v43
  %v92 = vunpack.c.l.b16 %v44
  %v93 = vunpack.c.l.b16 %v45
  %v94 = vunpack.c.l.b16 %v46
  %v95 = vunpack.c.l.b16 %v47
  %v96 = vpack.c.b16 %v81, %v80
  %v97 = vpack.c.b16 %v83, %v82
  %v98 = vpack.c.b16 %v85, %v84
  %v99 = vpack.c.b16 %v87, %v86
  %v100 = vpack.c.b16 %v89, %v88
  %v101 = vpack.c.b16 %v91, %v90
  %v102 = vpack.c.b16 %v93, %v92
  %v103 = vpack.c.b16 %v95, %v94
  %v128 = vunpack.c.l.b16 %v48
  %v129 = vunpack.c.l.b16 %v49
  %v130 = vunpack.c.l.b16 %v50
  %v131 = vunpack.c.l.b16 %v51
  %v132 = vunpack.c.l.b16 %v52
  %v133 = vunpack.c.l.b16 %v53
  %v134 = vunpack.c.l.b16 %v54
  %v135 = vunpack.c.l.b16 %v55
  %v136 = vunpack.c.l.b16 %v56
  %v137 = vunpack.c.l.b16 %v57
  %v138 = vunpack.c.l.b16 %v58
  %v139 = vunpack.c.l.b16 %v59
  %v140 = vunpack.c.l.b16 %v60
  %v141 = vunpack.c.l.b16 %v61
  %v142 = vunpack.c.l.b16 %v62
  %v143 = vunpack.c.l.b16 %v63
  %v144 = vpack.c.b16 %v129, %v128
  %v145 = vpack.c.b16 %v131, %v130
  %v146 = vpack.c.b16 %v133, %v132
  %v147 = vpack.c.b16 %v135, %v134
  %v148 = vpack.c.b16 %v137, %v136
  %v149 = vpack.c.b16 %v139, %v138
  %v150 = vpack.c.b16 %v141, %v140
  %v151 = vpack.c.b16 %v143, %v142
  %160 = vmatprep.subr.bf16.mxu0 0
  %161 = vmatpush1.bf16.msra.mxu0 %v144
  %162 = vmatprep.subr.bf16.mxu0 0
  %163 = vmatpush1.bf16.msra.mxu0 %v145
  %164 = vmatprep.subr.bf16.mxu0 0
  %165 = vmatpush1.bf16.msra.mxu0 %v146
  %166 = vmatprep.subr.bf16.mxu0 0
  %167 = vmatpush1.bf16.msra.mxu0 %v147
  %168 = vmatprep.subr.bf16.mxu0 0
  %169 = vmatpush1.bf16.msra.mxu0 %v148
  %170 = vmatprep.subr.bf16.mxu0 0
  %171 = vmatpush1.bf16.msra.mxu0 %v149
  %172 = vmatprep.subr.bf16.mxu0 0
  %173 = vmatpush1.bf16.msra.mxu0 %v150
  %174 = vmatprep.subr.bf16.mxu0 0
  %175 = vmatpush1.bf16.msra.mxu0 %v151
  %176 = vmatprep.subr.bf16.mxu0 0
  %177 = vmatpush1.bf16.msra.mxu0 0
  %178 = vmatprep.subr.bf16.mxu0 0
  %179 = vmatpush1.bf16.msra.mxu0 0
  %180 = vmatprep.subr.bf16.mxu0 0
  %181 = vmatpush1.bf16.msra.mxu0 0
  %182 = vmatprep.subr.bf16.mxu0 0
  %183 = vmatpush1.bf16.msra.mxu0 0
  %184 = vmatprep.subr.bf16.mxu0 0
  %185 = vmatpush1.bf16.msra.mxu0 0
  %186 = vmatprep.subr.bf16.mxu0 0
  %187 = vmatpush1.bf16.msra.mxu0 0
  %188 = vmatprep.subr.bf16.mxu0 0
  %189 = vmatpush1.bf16.msra.mxu0 0
  %190 = vmatprep.subr.bf16.mxu0 0
  %191 = vmatpush1.bf16.msra.mxu0 0
  %192 = vmatprep.mubr.bf16.mxu0 0
  %193 = vmatmul.mubr.bf16.gmra.mrb[0].mxu0 %v96
  %v194 = vpop.f32.mrb[0].mxu0
  %v195 = vadd.f32 0.0, %v194
  %v196 = vpop.f32.mrb[0].mxu0
  %v197 = vpop.f32.mrb[0].mxu0
  %v198 = vadd.f32 0.0, %v197
  %v199 = vpop.f32.mrb[0].mxu0
  %200 = vmatprep.mubr.bf16.mxu0 0
  %201 = vmatmul.mubr.bf16.gmra.mrb[0].mxu0 %v97
  %v202 = vpop.f32.mrb[0].mxu0
  %v203 = vadd.f32 0.0, %v202
  %v204 = vpop.f32.mrb[0].mxu0
  %v205 = vpop.f32.mrb[0].mxu0
  %v206 = vadd.f32 0.0, %v205
  %v207 = vpop.f32.mrb[0].mxu0
  %208 = vmatprep.mubr.bf16.mxu0 0
  %209 = vmatmul.mubr.bf16.gmra.mrb[0].mxu0 %v98
  %v210 = vpop.f32.mrb[0].mxu0
  %v211 = vadd.f32 0.0, %v210
  %v212 = vpop.f32.mrb[0].mxu0
  %v213 = vpop.f32.mrb[0].mxu0
  %v214 = vadd.f32 0.0, %v213
  %v215 = vpop.f32.mrb[0].mxu0
  %216 = vmatprep.mubr.bf16.mxu0 0
  %217 = vmatmul.mubr.bf16.gmra.mrb[0].mxu0 %v99
  %v218 = vpop.f32.mrb[0].mxu0
  %v219 = vadd.f32 0.0, %v218
  %v220 = vpop.f32.mrb[0].mxu0
  %v221 = vpop.f32.mrb[0].mxu0
  %v222 = vadd.f32 0.0, %v221
  %v223 = vpop.f32.mrb[0].mxu0
  %224 = vmatprep.mubr.bf16.mxu0 0
  %225 = vmatmul.mubr.bf16.gmra.mrb[0].mxu0 %v100
  %v226 = vpop.f32.mrb[0].mxu0
  %v227 = vadd.f32 0.0, %v226
  %v228 = vpop.f32.mrb[0].mxu0
  %v229 = vpop.f32.mrb[0].mxu0
  %v230 = vadd.f32 0.0, %v229
  %v231 = vpop.f32.mrb[0].mxu0
  %232 = vmatprep.mubr.bf16.mxu0 0
  %233 = vmatmul.mubr.bf16.gmra.mrb[0].mxu0 %v101
  %v234 = vpop.f32.mrb[0].mxu0
  %v235 = vadd.f32 0.0, %v234
  %v236 = vpop.f32.mrb[0].mxu0
  %v237 = vpop.f32.mrb[0].mxu0
  %v238 = vadd.f32 0.0, %v237
  %v239 = vpop.f32.mrb[0].mxu0
  %240 = vmatprep.mubr.bf16.mxu0 0
  %241 = vmatmul.mubr.bf16.gmra.mrb[0].mxu0 %v102
  %v242 = vpop.f32.mrb[0].mxu0
  %v243 = vadd.f32 0.0, %v242
  %v244 = vpop.f32.mrb[0].mxu0
  %v245 = vpop.f32.mrb[0].mxu0
  %v246 = vadd.f32 0.0, %v245
  %v247 = vpop.f32.mrb[0].mxu0
  %248 = vmatprep.mubr.bf16.mxu0 0
  %249 = vmatmul.mubr.bf16.gmra.mrb[0].mxu0 %v103
  %v250 = vpop.f32.mrb[0].mxu0
  %v251 = vadd.f32 0.0, %v250
  %v252 = vpop.f32.mrb[0].mxu0
  %v253 = vpop.f32.mrb[0].mxu0
  %v254 = vadd.f32 0.0, %v253
  %v255 = vpop.f32.mrb[0].mxu0
  %256 = vdwg.mxu0
  %v257 = vld [vmem:[%s6] sm:$0x1]
  %258 = vmatprep.subr.mxu0 0.0
  %259 = vmatpush1.xpose.msra.mxu0 %v195
  %260 = vmatprep.subr.mxu0 0.0
  %261 = vmatpush1.xpose.msra.mxu0 %v198
  %262 = vmatprep.subr.mxu0 0.0
  %263 = vmatpush1.xpose.msra.mxu0 %v203
  %264 = vmatprep.subr.mxu0 0.0
  %265 = vmatpush1.xpose.msra.mxu0 %v206
  %266 = vmatprep.subr.mxu0 0.0
  %267 = vmatpush1.xpose.msra.mxu0 %v211
  %268 = vmatprep.subr.mxu0 0.0
  %269 = vmatpush1.xpose.msra.mxu0 %v214
  %270 = vmatprep.subr.mxu0 0.0
  %271 = vmatpush1.xpose.msra.mxu0 %v219
  %272 = vmatprep.subr.mxu0 0.0
  %273 = vmatpush1.xpose.msra.mxu0 %v222
  %274 = vmatprep.subr.mxu0 0.0
  %275 = vmatpush1.xpose.msra.mxu0 %v227
  %276 = vmatprep.subr.mxu0 0.0
  %277 = vmatpush1.xpose.msra.mxu0 %v230
  %278 = vmatprep.subr.mxu0 0.0
  %279 = vmatpush1.xpose.msra.mxu0 %v235
  %280 = vmatprep.subr.mxu0 0.0
  %281 = vmatpush1.xpose.msra.mxu0 %v238
  %282 = vmatprep.subr.mxu0 0.0
  %283 = vmatpush1.xpose.msra.mxu0 %v243
  %284 = vmatprep.subr.mxu0 0.0
  %285 = vmatpush1.xpose.msra.mxu0 %v246
  %286 = vmatprep.subr.mxu0 0.0
  %287 = vmatpush1.xpose.msra.mxu0 %v251
  %288 = vmatprep.subr.mxu0 0.0
  %289 = vmatpush1.xpose.msra.mxu0 %v254
  %290 = vmatprep.subr.mxu0 0.0
  %291 = vmatpush1.xpose.msra.mxu0 0.0
  %292 = vmatprep.subr.mxu0 0.0
  %293 = vmatpush1.xpose.msra.mxu0 0.0
  %294 = vmatprep.subr.mxu0 0.0
  %295 = vmatpush1.xpose.msra.mxu0 0.0
  %296 = vmatprep.subr.mxu0 0.0
  %297 = vmatpush1.xpose.msra.mxu0 0.0
  %298 = vmatprep.subr.mxu0 0.0
  %299 = vmatpush1.xpose.msra.mxu0 0.0
  %300 = vmatprep.subr.mxu0 0.0
  %301 = vmatpush1.xpose.msra.mxu0 0.0
  %302 = vmatprep.subr.mxu0 0.0
  %303 = vmatpush1.xpose.msra.mxu0 0.0
  %304 = vmatprep.subr.mxu0 0.0
  %305 = vmatpush1.xpose.msra.mxu0 0.0
  %306 = vmatprep.subr.mxu0 0.0
  %307 = vmatpush1.xpose.msra.mxu0 0.0
  %308 = vmatprep.subr.mxu0 0.0
  %309 = vmatpush1.xpose.msra.mxu0 0.0
  %310 = vmatprep.subr.mxu0 0.0
  %311 = vmatpush1.xpose.msra.mxu0 0.0
  %312 = vmatprep.subr.mxu0 0.0
  %313 = vmatpush1.xpose.msra.mxu0 0.0
  %314 = vmatprep.subr.mxu0 0.0
  %315 = vmatpush1.xpose.msra.mxu0 0.0
  %316 = vmatprep.subr.mxu0 0.0
  %317 = vmatpush1.xpose.msra.mxu0 0.0
  %318 = vmatprep.subr.mxu0 0.0
  %319 = vmatpush1.xpose.msra.mxu0 0.0
  %320 = vmatprep.subr.mxu0 0.0
  %321 = vmatpush1.xpose.msra.mxu0 0.0
  %322 = vmatprep.mubr.f32.mxu0 0.0
  %323 = vmatmul.mubr.f32.gmra.mrb[0].mxu0 %v257
  %v324 = vpop.f32.mrb[0].mxu0
  %v325 = vadd.f32 0.0, %v324
  %v326 = vpop.f32.mrb[0].mxu0
  %327 = vdwg.mxu0
  %v328 = vmul.f32 %v325, 0.5
  %v329 = vld [vmem:[%s7] sm:$0x1]
  %v331 = vlaneseq
  %v332 = vshrl.u32 %v331, 7
  %v333 = vsub.s32 0, %v332
  %v334 = vrot.slane %v329, %v333
  %v336 = vmul.f32 %v195, %v334
  %v337 = vmul.f32 %v198, %v334
  %v338 = vmul.f32 %v203, %v334
  %v339 = vmul.f32 %v206, %v334
  %v340 = vmul.f32 %v211, %v334
  %v341 = vmul.f32 %v214, %v334
  %v342 = vmul.f32 %v219, %v334
  %v343 = vmul.f32 %v222, %v334
  %v344 = vmul.f32 %v227, %v334
  %v345 = vmul.f32 %v230, %v334
  %v346 = vmul.f32 %v235, %v334
  %v347 = vmul.f32 %v238, %v334
  %v348 = vmul.f32 %v243, %v334
  %v349 = vmul.f32 %v246, %v334
  %v350 = vmul.f32 %v251, %v334
  %v351 = vmul.f32 %v254, %v334
  %352 = vadd.xlane.f32.xlu0 %v336
  %v353 = vpop.xlane.xlu0 %352
  %354 = vadd.xlane.f32.xlu0 %v337
  %v355 = vpop.xlane.xlu0 %354
  %356 = vadd.xlane.f32.xlu0 %v338
  %v357 = vpop.xlane.xlu0 %356
  %358 = vadd.xlane.f32.xlu0 %v339
  %v359 = vpop.xlane.xlu0 %358
  %360 = vadd.xlane.f32.xlu0 %v340
  %v361 = vpop.xlane.xlu0 %360
  %362 = vadd.xlane.f32.xlu0 %v341
  %v363 = vpop.xlane.xlu0 %362
  %364 = vadd.xlane.f32.xlu0 %v342
  %v365 = vpop.xlane.xlu0 %364
  %366 = vadd.xlane.f32.xlu0 %v343
  %v367 = vpop.xlane.xlu0 %366
  %368 = vadd.xlane.f32.xlu0 %v344
  %v369 = vpop.xlane.xlu0 %368
  %370 = vadd.xlane.f32.xlu0 %v345
  %v371 = vpop.xlane.xlu0 %370
  %372 = vadd.xlane.f32.xlu0 %v346
  %v373 = vpop.xlane.xlu0 %372
  %374 = vadd.xlane.f32.xlu0 %v347
  %v375 = vpop.xlane.xlu0 %374
  %376 = vadd.xlane.f32.xlu0 %v348
  %v377 = vpop.xlane.xlu0 %376
  %378 = vadd.xlane.f32.xlu0 %v349
  %v379 = vpop.xlane.xlu0 %378
  %380 = vadd.xlane.f32.xlu0 %v350
  %v381 = vpop.xlane.xlu0 %380
  %382 = vadd.xlane.f32.xlu0 %v351
  %v383 = vpop.xlane.xlu0 %382
  %v384 = vmul.f32 %v353, 0.5
  %v385 = vmul.f32 %v355, 0.5
  %v386 = vmul.f32 %v357, 0.5
  %v387 = vmul.f32 %v359, 0.5
  %v388 = vmul.f32 %v361, 0.5
  %v389 = vmul.f32 %v363, 0.5
  %v390 = vmul.f32 %v365, 0.5
  %v391 = vmul.f32 %v367, 0.5
  %v392 = vmul.f32 %v369, 0.5
  %v393 = vmul.f32 %v371, 0.5
  %v394 = vmul.f32 %v373, 0.5
  %v395 = vmul.f32 %v375, 0.5
  %v396 = vmul.f32 %v377, 0.5
  %v397 = vmul.f32 %v379, 0.5
  %v398 = vmul.f32 %v381, 0.5
  %v399 = vmul.f32 %v383, 0.5
  %v400 = vlaneseq
  %v401 = vand.u32 %v400, 127
  %vm402 = vcmp.eq.s32.totalorder %v401, 32
  %v403 = vsel %vm402, 1.0, %v195
  %v404 = vsel %vm402, 1.0, %v198
  %v405 = vsel %vm402, 1.0, %v203
  %v406 = vsel %vm402, 1.0, %v206
  %v407 = vsel %vm402, 1.0, %v211
  %v408 = vsel %vm402, 1.0, %v214
  %v409 = vsel %vm402, 1.0, %v219
  %v410 = vsel %vm402, 1.0, %v222
  %v411 = vsel %vm402, 1.0, %v227
  %v412 = vsel %vm402, 1.0, %v230
  %v413 = vsel %vm402, 1.0, %v235
  %v414 = vsel %vm402, 1.0, %v238
  %v415 = vsel %vm402, 1.0, %v243
  %v416 = vsel %vm402, 1.0, %v246
  %v417 = vsel %vm402, 1.0, %v251
  %v418 = vsel %vm402, 1.0, %v254
  %v419 = vpack.c.bf16 %v404, %v403
  %v420 = vpack.c.bf16 %v406, %v405
  %v421 = vpack.c.bf16 %v408, %v407
  %v422 = vpack.c.bf16 %v410, %v409
  %v423 = vpack.c.bf16 %v412, %v411
  %v424 = vpack.c.bf16 %v414, %v413
  %v425 = vpack.c.bf16 %v416, %v415
  %v426 = vpack.c.bf16 %v418, %v417
  %v427 = vlaneseq
  %v428 = vshrl.u32 %v427, 7
  %v429 = vsub.s32 0, %v428
  %v430 = vrot.slane %v328, %v429
  %v431 = vadd.f32 %v384, %v430
  %v432 = vadd.f32 %v385, %v430
  %v433 = vadd.f32 %v386, %v430
  %v434 = vadd.f32 %v387, %v430
  %v435 = vadd.f32 %v388, %v430
  %v436 = vadd.f32 %v389, %v430
  %v437 = vadd.f32 %v390, %v430
  %v438 = vadd.f32 %v391, %v430
  %v439 = vadd.f32 %v392, %v430
  %v440 = vadd.f32 %v393, %v430
  %v441 = vadd.f32 %v394, %v430
  %v442 = vadd.f32 %v395, %v430
  %v443 = vadd.f32 %v396, %v430
  %v444 = vadd.f32 %v397, %v430
  %v445 = vadd.f32 %v398, %v430
  %v446 = vadd.f32 %v399, %v430
  %v447 = vld [vmem:[%s1] sm:$0xff]
  %v448 = vld [vmem:[%s1 + $0x8] sm:$0xff]
  %v449 = vld [vmem:[%s1 + $0x10] sm:$0xff]
  %v450 = vld [vmem:[%s1 + $0x18] sm:$0xff]
  %v451 = vunpack.c.0.s8 %v447
  %v452 = vunpack.c.1.s8 %v447
  %v453 = vunpack.c.2.s8 %v447
  %v454 = vunpack.c.3.s8 %v447
  %v455 = vunpack.c.0.s8 %v448
  %v456 = vunpack.c.1.s8 %v448
  %v457 = vunpack.c.2.s8 %v448
  %v458 = vunpack.c.3.s8 %v448
  %v459 = vunpack.c.0.s8 %v449
  %v460 = vunpack.c.1.s8 %v449
  %v461 = vunpack.c.2.s8 %v449
  %v462 = vunpack.c.3.s8 %v449
  %v463 = vunpack.c.0.s8 %v450
  %v464 = vunpack.c.1.s8 %v450
  %v465 = vunpack.c.2.s8 %v450
  %v466 = vunpack.c.3.s8 %v450
  %v467 = vcvt.s32.f32 %v451
  %v468 = vcvt.s32.f32 %v452
  %v469 = vcvt.s32.f32 %v453
  %v470 = vcvt.s32.f32 %v454
  %v471 = vcvt.s32.f32 %v455
  %v472 = vcvt.s32.f32 %v456
  %v473 = vcvt.s32.f32 %v457
  %v474 = vcvt.s32.f32 %v458
  %v475 = vcvt.s32.f32 %v459
  %v476 = vcvt.s32.f32 %v460
  %v477 = vcvt.s32.f32 %v461
  %v478 = vcvt.s32.f32 %v462
  %v479 = vcvt.s32.f32 %v463
  %v480 = vcvt.s32.f32 %v464
  %v481 = vcvt.s32.f32 %v465
  %v482 = vcvt.s32.f32 %v466
  %v483 = vtanh.pop %v431
  %v484 = vtanh.pop %v432
  %v485 = vtanh.pop %v433
  %v486 = vtanh.pop %v434
  %v487 = vtanh.pop %v435
  %v488 = vtanh.pop %v436
  %v489 = vtanh.pop %v437
  %v490 = vtanh.pop %v438
  %v491 = vtanh.pop %v439
  %v492 = vtanh.pop %v440
  %v493 = vtanh.pop %v441
  %v494 = vtanh.pop %v442
  %v495 = vtanh.pop %v443
  %v496 = vtanh.pop %v444
  %v497 = vtanh.pop %v445
  %v498 = vtanh.pop %v446
  %v499 = vmul.f32 %v483, 0.5
  %v500 = vmul.f32 %v484, 0.5
  %v501 = vmul.f32 %v485, 0.5
  %v502 = vmul.f32 %v486, 0.5
  %v503 = vmul.f32 %v487, 0.5
  %v504 = vmul.f32 %v488, 0.5
  %v505 = vmul.f32 %v489, 0.5
  %v506 = vmul.f32 %v490, 0.5
  %v507 = vmul.f32 %v491, 0.5
  %v508 = vmul.f32 %v492, 0.5
  %v509 = vmul.f32 %v493, 0.5
  %v510 = vmul.f32 %v494, 0.5
  %v511 = vmul.f32 %v495, 0.5
  %v512 = vmul.f32 %v496, 0.5
  %v513 = vmul.f32 %v497, 0.5
  %v514 = vmul.f32 %v498, 0.5
  %v515 = vmul.f32 %v499, 1.442695
  %v516 = vpow.pop %v515
  %v517 = vmul.f32 %v500, 1.442695
  %v518 = vpow.pop %v517
  %v519 = vmul.f32 %v501, 1.442695
  %v520 = vpow.pop %v519
  %v521 = vmul.f32 %v502, 1.442695
  %v522 = vpow.pop %v521
  %v523 = vmul.f32 %v503, 1.442695
  %v524 = vpow.pop %v523
  %v525 = vmul.f32 %v504, 1.442695
  %v526 = vpow.pop %v525
  %v527 = vmul.f32 %v505, 1.442695
  %v528 = vpow.pop %v527
  %v529 = vmul.f32 %v506, 1.442695
  %v530 = vpow.pop %v529
  %v531 = vmul.f32 %v507, 1.442695
  %v532 = vpow.pop %v531
  %v533 = vmul.f32 %v508, 1.442695
  %v534 = vpow.pop %v533
  %v535 = vmul.f32 %v509, 1.442695
  %v536 = vpow.pop %v535
  %v537 = vmul.f32 %v510, 1.442695
  %v538 = vpow.pop %v537
  %v539 = vmul.f32 %v511, 1.442695
  %v540 = vpow.pop %v539
  %v541 = vmul.f32 %v512, 1.442695
  %v542 = vpow.pop %v541
  %v543 = vmul.f32 %v513, 1.442695
  %v544 = vpow.pop %v543
  %v545 = vmul.f32 %v514, 1.442695
  %v546 = vpow.pop %v545
  %v547 = vmul.f32 %v467, %v516
  %v548 = vmul.f32 %v468, %v518
  %v549 = vmul.f32 %v469, %v520
  %v550 = vmul.f32 %v470, %v522
  %v551 = vmul.f32 %v471, %v524
  %v552 = vmul.f32 %v472, %v526
  %v553 = vmul.f32 %v473, %v528
  %v554 = vmul.f32 %v474, %v530
  %v555 = vmul.f32 %v475, %v532
  %v556 = vmul.f32 %v476, %v534
  %v557 = vmul.f32 %v477, %v536
  %v558 = vmul.f32 %v478, %v538
  %v559 = vmul.f32 %v479, %v540
  %v560 = vmul.f32 %v480, %v542
  %v561 = vmul.f32 %v481, %v544
  %v562 = vmul.f32 %v482, %v546
  %v563 = vpack.c.bf16 %v548, %v547
  %v564 = vpack.c.bf16 %v550, %v549
  %v565 = vpack.c.bf16 %v552, %v551
  %v566 = vpack.c.bf16 %v554, %v553
  %v567 = vpack.c.bf16 %v556, %v555
  %v568 = vpack.c.bf16 %v558, %v557
  %v569 = vpack.c.bf16 %v560, %v559
  %v570 = vpack.c.bf16 %v562, %v561
  %571 = vmatprep.subr.bf16.mxu0 0
  %572 = vmatpush1.bf16.msra.mxu0 %v419
  %573 = vmatprep.subr.bf16.mxu0 0
  %574 = vmatpush1.bf16.msra.mxu0 %v420
  %575 = vmatprep.subr.bf16.mxu0 0
  %576 = vmatpush1.bf16.msra.mxu0 %v421
  %577 = vmatprep.subr.bf16.mxu0 0
  %578 = vmatpush1.bf16.msra.mxu0 %v422
  %579 = vmatprep.subr.bf16.mxu0 0
  %580 = vmatpush1.bf16.msra.mxu0 %v423
  %581 = vmatprep.subr.bf16.mxu0 0
  %582 = vmatpush1.bf16.msra.mxu0 %v424
  %583 = vmatprep.subr.bf16.mxu0 0
  %584 = vmatpush1.bf16.msra.mxu0 %v425
  %585 = vmatprep.subr.bf16.mxu0 0
  %586 = vmatpush1.bf16.msra.mxu0 %v426
  %587 = vmatprep.subr.bf16.mxu0 0
  %588 = vmatpush1.bf16.msra.mxu0 0
  %589 = vmatprep.subr.bf16.mxu0 0
  %590 = vmatpush1.bf16.msra.mxu0 0
  %591 = vmatprep.subr.bf16.mxu0 0
  %592 = vmatpush1.bf16.msra.mxu0 0
  %593 = vmatprep.subr.bf16.mxu0 0
  %594 = vmatpush1.bf16.msra.mxu0 0
  %595 = vmatprep.subr.bf16.mxu0 0
  %596 = vmatpush1.bf16.msra.mxu0 0
  %597 = vmatprep.subr.bf16.mxu0 0
  %598 = vmatpush1.bf16.msra.mxu0 0
  %599 = vmatprep.subr.bf16.mxu0 0
  %600 = vmatpush1.bf16.msra.mxu0 0
  %601 = vmatprep.subr.bf16.mxu0 0
  %602 = vmatpush1.bf16.msra.mxu0 0
  %603 = vmatprep.mubr.bf16.mxu0 0
  %604 = vmatmul.mubr.bf16.gmra.mrb[0].mxu0 %v563
  %v605 = vpop.f32.mrb[0].mxu0
  %v606 = vadd.f32 0.0, %v605
  %v607 = vpop.f32.mrb[0].mxu0
  %v608 = vpop.f32.mrb[0].mxu0
  %v609 = vadd.f32 0.0, %v608
  %v610 = vpop.f32.mrb[0].mxu0
  %611 = vmatprep.mubr.bf16.mxu0 0
  %612 = vmatmul.mubr.bf16.gmra.mrb[0].mxu0 %v564
  %v613 = vpop.f32.mrb[0].mxu0
  %v614 = vadd.f32 0.0, %v613
  %v615 = vpop.f32.mrb[0].mxu0
  %v616 = vpop.f32.mrb[0].mxu0
  %v617 = vadd.f32 0.0, %v616
  %v618 = vpop.f32.mrb[0].mxu0
  %619 = vmatprep.mubr.bf16.mxu0 0
  %620 = vmatmul.mubr.bf16.gmra.mrb[0].mxu0 %v565
  %v621 = vpop.f32.mrb[0].mxu0
  %v622 = vadd.f32 0.0, %v621
  %v623 = vpop.f32.mrb[0].mxu0
  %v624 = vpop.f32.mrb[0].mxu0
  %v625 = vadd.f32 0.0, %v624
  %v626 = vpop.f32.mrb[0].mxu0
  %627 = vmatprep.mubr.bf16.mxu0 0
  %628 = vmatmul.mubr.bf16.gmra.mrb[0].mxu0 %v566
  %v629 = vpop.f32.mrb[0].mxu0
  %v630 = vadd.f32 0.0, %v629
  %v631 = vpop.f32.mrb[0].mxu0
  %v632 = vpop.f32.mrb[0].mxu0
  %v633 = vadd.f32 0.0, %v632
  %v634 = vpop.f32.mrb[0].mxu0
  %635 = vmatprep.mubr.bf16.mxu0 0
  %636 = vmatmul.mubr.bf16.gmra.mrb[0].mxu0 %v567
  %v637 = vpop.f32.mrb[0].mxu0
  %v638 = vadd.f32 0.0, %v637
  %v639 = vpop.f32.mrb[0].mxu0
  %v640 = vpop.f32.mrb[0].mxu0
  %v641 = vadd.f32 0.0, %v640
  %v642 = vpop.f32.mrb[0].mxu0
  %643 = vmatprep.mubr.bf16.mxu0 0
  %644 = vmatmul.mubr.bf16.gmra.mrb[0].mxu0 %v568
  %v645 = vpop.f32.mrb[0].mxu0
  %v646 = vadd.f32 0.0, %v645
  %v647 = vpop.f32.mrb[0].mxu0
  %v648 = vpop.f32.mrb[0].mxu0
  %v649 = vadd.f32 0.0, %v648
  %v650 = vpop.f32.mrb[0].mxu0
  %651 = vmatprep.mubr.bf16.mxu0 0
  %652 = vmatmul.mubr.bf16.gmra.mrb[0].mxu0 %v569
  %v653 = vpop.f32.mrb[0].mxu0
  %v654 = vadd.f32 0.0, %v653
  %v655 = vpop.f32.mrb[0].mxu0
  %v656 = vpop.f32.mrb[0].mxu0
  %v657 = vadd.f32 0.0, %v656
  %v658 = vpop.f32.mrb[0].mxu0
  %659 = vmatprep.mubr.bf16.mxu0 0
  %660 = vmatmul.mubr.bf16.gmra.mrb[0].mxu0 %v570
  %v661 = vpop.f32.mrb[0].mxu0
  %v662 = vadd.f32 0.0, %v661
  %v663 = vpop.f32.mrb[0].mxu0
  %v664 = vpop.f32.mrb[0].mxu0
  %v665 = vadd.f32 0.0, %v664
  %v666 = vpop.f32.mrb[0].mxu0
  %667 = vdwg.mxu0
  %vm668 = vcmp.gt.f32.partialorder %v606, 0.0
  %vm669 = vcmp.gt.f32.partialorder %v609, 0.0
  %vm670 = vcmp.gt.f32.partialorder %v614, 0.0
  %vm671 = vcmp.gt.f32.partialorder %v617, 0.0
  %vm672 = vcmp.gt.f32.partialorder %v622, 0.0
  %vm673 = vcmp.gt.f32.partialorder %v625, 0.0
  %vm674 = vcmp.gt.f32.partialorder %v630, 0.0
  %vm675 = vcmp.gt.f32.partialorder %v633, 0.0
  %vm676 = vcmp.gt.f32.partialorder %v638, 0.0
  %vm677 = vcmp.gt.f32.partialorder %v641, 0.0
  %vm678 = vcmp.gt.f32.partialorder %v646, 0.0
  %vm679 = vcmp.gt.f32.partialorder %v649, 0.0
  %vm680 = vcmp.gt.f32.partialorder %v654, 0.0
  %vm681 = vcmp.gt.f32.partialorder %v657, 0.0
  %vm682 = vcmp.gt.f32.partialorder %v662, 0.0
  %vm683 = vcmp.gt.f32.partialorder %v665, 0.0
  %v684 = vrcp.pop %v606
  %v685 = vrcp.pop %v609
  %v686 = vrcp.pop %v614
  %v687 = vrcp.pop %v617
  %v688 = vrcp.pop %v622
  %v689 = vrcp.pop %v625
  %v690 = vrcp.pop %v630
  %v691 = vrcp.pop %v633
  %v692 = vrcp.pop %v638
  %v693 = vrcp.pop %v641
  %v694 = vrcp.pop %v646
  %v695 = vrcp.pop %v649
  %v696 = vrcp.pop %v654
  %v697 = vrcp.pop %v657
  %v698 = vrcp.pop %v662
  %v699 = vrcp.pop %v665
  %v700 = vsel %vm668, %v684, 0.0
  %v701 = vsel %vm669, %v685, 0.0
  %v702 = vsel %vm670, %v686, 0.0
  %v703 = vsel %vm671, %v687, 0.0
  %v704 = vsel %vm672, %v688, 0.0
  %v705 = vsel %vm673, %v689, 0.0
  %v706 = vsel %vm674, %v690, 0.0
  %v707 = vsel %vm675, %v691, 0.0
  %v708 = vsel %vm676, %v692, 0.0
  %v709 = vsel %vm677, %v693, 0.0
  %v710 = vsel %vm678, %v694, 0.0
  %v711 = vsel %vm679, %v695, 0.0
  %v712 = vsel %vm680, %v696, 0.0
  %v713 = vsel %vm681, %v697, 0.0
  %v714 = vsel %vm682, %v698, 0.0
  %v715 = vsel %vm683, %v699, 0.0
  %717 = vset.pattern.permute.xlu0 32
  %718 = vperm.xlu0 %717, %v700
  %v719 = vpop.permute.xlu0 %718
  %722 = vset.pattern.permute.xlu0 32
  %723 = vperm.xlu0 %722, %v701
  %v724 = vpop.permute.xlu0 %723
  %727 = vset.pattern.permute.xlu0 32
  %728 = vperm.xlu0 %727, %v702
  %v729 = vpop.permute.xlu0 %728
  %732 = vset.pattern.permute.xlu0 32
  %733 = vperm.xlu0 %732, %v703
  %v734 = vpop.permute.xlu0 %733
  %737 = vset.pattern.permute.xlu0 32
  %738 = vperm.xlu0 %737, %v704
  %v739 = vpop.permute.xlu0 %738
  %742 = vset.pattern.permute.xlu0 32
  %743 = vperm.xlu0 %742, %v705
  %v744 = vpop.permute.xlu0 %743
  %747 = vset.pattern.permute.xlu0 32
  %748 = vperm.xlu0 %747, %v706
  %v749 = vpop.permute.xlu0 %748
  %752 = vset.pattern.permute.xlu0 32
  %753 = vperm.xlu0 %752, %v707
  %v754 = vpop.permute.xlu0 %753
  %757 = vset.pattern.permute.xlu0 32
  %758 = vperm.xlu0 %757, %v708
  %v759 = vpop.permute.xlu0 %758
  %762 = vset.pattern.permute.xlu0 32
  %763 = vperm.xlu0 %762, %v709
  %v764 = vpop.permute.xlu0 %763
  %767 = vset.pattern.permute.xlu0 32
  %768 = vperm.xlu0 %767, %v710
  %v769 = vpop.permute.xlu0 %768
  %772 = vset.pattern.permute.xlu0 32
  %773 = vperm.xlu0 %772, %v711
  %v774 = vpop.permute.xlu0 %773
  %777 = vset.pattern.permute.xlu0 32
  %778 = vperm.xlu0 %777, %v712
  %v779 = vpop.permute.xlu0 %778
  %782 = vset.pattern.permute.xlu0 32
  %783 = vperm.xlu0 %782, %v713
  %v784 = vpop.permute.xlu0 %783
  %787 = vset.pattern.permute.xlu0 32
  %788 = vperm.xlu0 %787, %v714
  %v789 = vpop.permute.xlu0 %788
  %792 = vset.pattern.permute.xlu0 32
  %793 = vperm.xlu0 %792, %v715
  %v794 = vpop.permute.xlu0 %793
  %v796 = vmul.f32 %v606, %v719
  %v797 = vmul.f32 %v609, %v724
  %v798 = vmul.f32 %v614, %v729
  %v799 = vmul.f32 %v617, %v734
  %v800 = vmul.f32 %v622, %v739
  %v801 = vmul.f32 %v625, %v744
  %v802 = vmul.f32 %v630, %v749
  %v803 = vmul.f32 %v633, %v754
  %v804 = vmul.f32 %v638, %v759
  %v805 = vmul.f32 %v641, %v764
  %v806 = vmul.f32 %v646, %v769
  %v807 = vmul.f32 %v649, %v774
  %v808 = vmul.f32 %v654, %v779
  %v809 = vmul.f32 %v657, %v784
  %v810 = vmul.f32 %v662, %v789
  %v811 = vmul.f32 %v665, %v794
  %vm812 = vcmp.gt.f32.partialorder %v796, 0.0
  %vm813 = vcmp.gt.f32.partialorder %v797, 0.0
  %vm814 = vcmp.gt.f32.partialorder %v798, 0.0
  %vm815 = vcmp.gt.f32.partialorder %v799, 0.0
  %vm816 = vcmp.gt.f32.partialorder %v800, 0.0
  %vm817 = vcmp.gt.f32.partialorder %v801, 0.0
  %vm818 = vcmp.gt.f32.partialorder %v802, 0.0
  %vm819 = vcmp.gt.f32.partialorder %v803, 0.0
  %vm820 = vcmp.gt.f32.partialorder %v804, 0.0
  %vm821 = vcmp.gt.f32.partialorder %v805, 0.0
  %vm822 = vcmp.gt.f32.partialorder %v806, 0.0
  %vm823 = vcmp.gt.f32.partialorder %v807, 0.0
  %vm824 = vcmp.gt.f32.partialorder %v808, 0.0
  %vm825 = vcmp.gt.f32.partialorder %v809, 0.0
  %vm826 = vcmp.gt.f32.partialorder %v810, 0.0
  %vm827 = vcmp.gt.f32.partialorder %v811, 0.0
  %v828 = vmul.f32 %v796, 1.442695
  %v829 = vpow.pop %v828
  %v830 = vmul.f32 %v797, 1.442695
  %v831 = vpow.pop %v830
  %v832 = vmul.f32 %v798, 1.442695
  %v833 = vpow.pop %v832
  %v834 = vmul.f32 %v799, 1.442695
  %v835 = vpow.pop %v834
  %v836 = vmul.f32 %v800, 1.442695
  %v837 = vpow.pop %v836
  %v838 = vmul.f32 %v801, 1.442695
  %v839 = vpow.pop %v838
  %v840 = vmul.f32 %v802, 1.442695
  %v841 = vpow.pop %v840
  %v842 = vmul.f32 %v803, 1.442695
  %v843 = vpow.pop %v842
  %v844 = vmul.f32 %v804, 1.442695
  %v845 = vpow.pop %v844
  %v846 = vmul.f32 %v805, 1.442695
  %v847 = vpow.pop %v846
  %v848 = vmul.f32 %v806, 1.442695
  %v849 = vpow.pop %v848
  %v850 = vmul.f32 %v807, 1.442695
  %v851 = vpow.pop %v850
  %v852 = vmul.f32 %v808, 1.442695
  %v853 = vpow.pop %v852
  %v854 = vmul.f32 %v809, 1.442695
  %v855 = vpow.pop %v854
  %v856 = vmul.f32 %v810, 1.442695
  %v857 = vpow.pop %v856
  %v858 = vmul.f32 %v811, 1.442695
  %v859 = vpow.pop %v858
  %v860 = vsub.f32 %v829, 1.0
  %v861 = vsub.f32 %v831, 1.0
  %v862 = vsub.f32 %v833, 1.0
  %v863 = vsub.f32 %v835, 1.0
  %v864 = vsub.f32 %v837, 1.0
  %v865 = vsub.f32 %v839, 1.0
  %v866 = vsub.f32 %v841, 1.0
  %v867 = vsub.f32 %v843, 1.0
  %v868 = vsub.f32 %v845, 1.0
  %v869 = vsub.f32 %v847, 1.0
  %v870 = vsub.f32 %v849, 1.0
  %v871 = vsub.f32 %v851, 1.0
  %v872 = vsub.f32 %v853, 1.0
  %v873 = vsub.f32 %v855, 1.0
  %v874 = vsub.f32 %v857, 1.0
  %v875 = vsub.f32 %v859, 1.0
  %v876 = vsel %vm812, %v796, %v860
  %v877 = vsel %vm813, %v797, %v861
  %v878 = vsel %vm814, %v798, %v862
  %v879 = vsel %vm815, %v799, %v863
  %v880 = vsel %vm816, %v800, %v864
  %v881 = vsel %vm817, %v801, %v865
  %v882 = vsel %vm818, %v802, %v866
  %v883 = vsel %vm819, %v803, %v867
  %v884 = vsel %vm820, %v804, %v868
  %v885 = vsel %vm821, %v805, %v869
  %v886 = vsel %vm822, %v806, %v870
  %v887 = vsel %vm823, %v807, %v871
  %v888 = vsel %vm824, %v808, %v872
  %v889 = vsel %vm825, %v809, %v873
  %v890 = vsel %vm826, %v810, %v874
  %v891 = vsel %vm827, %v811, %v875
  %v892 = vpack.c.bf16 %v877, %v876
  %v893 = vpack.c.bf16 %v879, %v878
  %v894 = vpack.c.bf16 %v881, %v880
  %v895 = vpack.c.bf16 %v883, %v882
  %v896 = vpack.c.bf16 %v885, %v884
  %v897 = vpack.c.bf16 %v887, %v886
  %v898 = vpack.c.bf16 %v889, %v888
  %v899 = vpack.c.bf16 %v891, %v890
  %v900 = vld [vmem:[%s3] sm:$0xf]
  %v901 = vld [vmem:[%s3 + $0x4] sm:$0xf]
  %v902 = vld [vmem:[%s3 + $0x8] sm:$0xf]
  %v903 = vld [vmem:[%s3 + $0xc] sm:$0xf]
  %v904 = vld [vmem:[%s3 + $0x10] sm:$0xf]
  %v905 = vld [vmem:[%s3 + $0x14] sm:$0xf]
  %v906 = vld [vmem:[%s3 + $0x18] sm:$0xf]
  %v907 = vld [vmem:[%s3 + $0x1c] sm:$0xf]
  %v908 = vld [vmem:[%s3 + $0x20] sm:$0xf]
  %v909 = vld [vmem:[%s3 + $0x24] sm:$0xf]
  %v910 = vld [vmem:[%s3 + $0x28] sm:$0xf]
  %v911 = vld [vmem:[%s3 + $0x2c] sm:$0xf]
  %v912 = vld [vmem:[%s3 + $0x30] sm:$0xf]
  %v913 = vld [vmem:[%s3 + $0x34] sm:$0xf]
  %v914 = vld [vmem:[%s3 + $0x38] sm:$0xf]
  %v915 = vld [vmem:[%s3 + $0x3c] sm:$0xf]
  %v932 = vunpack.c.l.b16 %v900
  %v933 = vunpack.c.l.b16 %v901
  %v934 = vunpack.c.l.b16 %v902
  %v935 = vunpack.c.l.b16 %v903
  %v936 = vunpack.c.l.b16 %v904
  %v937 = vunpack.c.l.b16 %v905
  %v938 = vunpack.c.l.b16 %v906
  %v939 = vunpack.c.l.b16 %v907
  %v940 = vunpack.c.l.b16 %v908
  %v941 = vunpack.c.l.b16 %v909
  %v942 = vunpack.c.l.b16 %v910
  %v943 = vunpack.c.l.b16 %v911
  %v944 = vunpack.c.l.b16 %v912
  %v945 = vunpack.c.l.b16 %v913
  %v946 = vunpack.c.l.b16 %v914
  %v947 = vunpack.c.l.b16 %v915
  %v948 = vpack.c.b16 %v933, %v932
  %v949 = vpack.c.b16 %v935, %v934
  %v950 = vpack.c.b16 %v937, %v936
  %v951 = vpack.c.b16 %v939, %v938
  %v952 = vpack.c.b16 %v941, %v940
  %v953 = vpack.c.b16 %v943, %v942
  %v954 = vpack.c.b16 %v945, %v944
  %v955 = vpack.c.b16 %v947, %v946
  %964 = vmatprep.subr.bf16.mxu0 0
  %965 = vmatpush1.bf16.msra.mxu0 %v948
  %966 = vmatprep.subr.bf16.mxu0 0
  %967 = vmatpush1.bf16.msra.mxu0 %v949
  %968 = vmatprep.subr.bf16.mxu0 0
  %969 = vmatpush1.bf16.msra.mxu0 %v950
  %970 = vmatprep.subr.bf16.mxu0 0
  %971 = vmatpush1.bf16.msra.mxu0 %v951
  %972 = vmatprep.subr.bf16.mxu0 0
  %973 = vmatpush1.bf16.msra.mxu0 %v952
  %974 = vmatprep.subr.bf16.mxu0 0
  %975 = vmatpush1.bf16.msra.mxu0 %v953
  %976 = vmatprep.subr.bf16.mxu0 0
  %977 = vmatpush1.bf16.msra.mxu0 %v954
  %978 = vmatprep.subr.bf16.mxu0 0
  %979 = vmatpush1.bf16.msra.mxu0 %v955
  %980 = vmatprep.subr.bf16.mxu0 0
  %981 = vmatpush1.bf16.msra.mxu0 0
  %982 = vmatprep.subr.bf16.mxu0 0
  %983 = vmatpush1.bf16.msra.mxu0 0
  %984 = vmatprep.subr.bf16.mxu0 0
  %985 = vmatpush1.bf16.msra.mxu0 0
  %986 = vmatprep.subr.bf16.mxu0 0
  %987 = vmatpush1.bf16.msra.mxu0 0
  %988 = vmatprep.subr.bf16.mxu0 0
  %989 = vmatpush1.bf16.msra.mxu0 0
  %990 = vmatprep.subr.bf16.mxu0 0
  %991 = vmatpush1.bf16.msra.mxu0 0
  %992 = vmatprep.subr.bf16.mxu0 0
  %993 = vmatpush1.bf16.msra.mxu0 0
  %994 = vmatprep.subr.bf16.mxu0 0
  %995 = vmatpush1.bf16.msra.mxu0 0
  %996 = vmatprep.mubr.bf16.mxu0 0
  %997 = vmatmul.mubr.bf16.gmra.mrb[0].mxu0 %v892
  %v998 = vpop.f32.mrb[0].mxu0
  %v999 = vadd.f32 0.0, %v998
  %v1000 = vpop.f32.mrb[0].mxu0
  %v1001 = vpop.f32.mrb[0].mxu0
  %v1002 = vadd.f32 0.0, %v1001
  %v1003 = vpop.f32.mrb[0].mxu0
  %1004 = vmatprep.mubr.bf16.mxu0 0
  %1005 = vmatmul.mubr.bf16.gmra.mrb[0].mxu0 %v893
  %v1006 = vpop.f32.mrb[0].mxu0
  %v1007 = vadd.f32 0.0, %v1006
  %v1008 = vpop.f32.mrb[0].mxu0
  %v1009 = vpop.f32.mrb[0].mxu0
  %v1010 = vadd.f32 0.0, %v1009
  %v1011 = vpop.f32.mrb[0].mxu0
  %1012 = vmatprep.mubr.bf16.mxu0 0
  %1013 = vmatmul.mubr.bf16.gmra.mrb[0].mxu0 %v894
  %v1014 = vpop.f32.mrb[0].mxu0
  %v1015 = vadd.f32 0.0, %v1014
  %v1016 = vpop.f32.mrb[0].mxu0
  %v1017 = vpop.f32.mrb[0].mxu0
  %v1018 = vadd.f32 0.0, %v1017
  %v1019 = vpop.f32.mrb[0].mxu0
  %1020 = vmatprep.mubr.bf16.mxu0 0
  %1021 = vmatmul.mubr.bf16.gmra.mrb[0].mxu0 %v895
  %v1022 = vpop.f32.mrb[0].mxu0
  %v1023 = vadd.f32 0.0, %v1022
  %v1024 = vpop.f32.mrb[0].mxu0
  %v1025 = vpop.f32.mrb[0].mxu0
  %v1026 = vadd.f32 0.0, %v1025
  %v1027 = vpop.f32.mrb[0].mxu0
  %1028 = vmatprep.mubr.bf16.mxu0 0
  %1029 = vmatmul.mubr.bf16.gmra.mrb[0].mxu0 %v896
  %v1030 = vpop.f32.mrb[0].mxu0
  %v1031 = vadd.f32 0.0, %v1030
  %v1032 = vpop.f32.mrb[0].mxu0
  %v1033 = vpop.f32.mrb[0].mxu0
  %v1034 = vadd.f32 0.0, %v1033
  %v1035 = vpop.f32.mrb[0].mxu0
  %1036 = vmatprep.mubr.bf16.mxu0 0
  %1037 = vmatmul.mubr.bf16.gmra.mrb[0].mxu0 %v897
  %v1038 = vpop.f32.mrb[0].mxu0
  %v1039 = vadd.f32 0.0, %v1038
  %v1040 = vpop.f32.mrb[0].mxu0
  %v1041 = vpop.f32.mrb[0].mxu0
  %v1042 = vadd.f32 0.0, %v1041
  %v1043 = vpop.f32.mrb[0].mxu0
  %1044 = vmatprep.mubr.bf16.mxu0 0
  %1045 = vmatmul.mubr.bf16.gmra.mrb[0].mxu0 %v898
  %v1046 = vpop.f32.mrb[0].mxu0
  %v1047 = vadd.f32 0.0, %v1046
  %v1048 = vpop.f32.mrb[0].mxu0
  %v1049 = vpop.f32.mrb[0].mxu0
  %v1050 = vadd.f32 0.0, %v1049
  %v1051 = vpop.f32.mrb[0].mxu0
  %1052 = vmatprep.mubr.bf16.mxu0 0
  %1053 = vmatmul.mubr.bf16.gmra.mrb[0].mxu0 %v899
  %v1054 = vpop.f32.mrb[0].mxu0
  %v1055 = vadd.f32 0.0, %v1054
  %v1056 = vpop.f32.mrb[0].mxu0
  %v1057 = vpop.f32.mrb[0].mxu0
  %v1058 = vadd.f32 0.0, %v1057
  %v1059 = vpop.f32.mrb[0].mxu0
  %1060 = vdwg.mxu0
  %1061 = vst [vmem:[%s8] sm:$0xff] %v999
  %1062 = vst [vmem:[%s8 + $0x8] sm:$0xff] %v1002
  %1063 = vst [vmem:[%s8 + $0x10] sm:$0xff] %v1007
  %1064 = vst [vmem:[%s8 + $0x18] sm:$0xff] %v1010
  %1065 = vst [vmem:[%s8 + $0x20] sm:$0xff] %v1015
  %1066 = vst [vmem:[%s8 + $0x28] sm:$0xff] %v1018
  %1067 = vst [vmem:[%s8 + $0x30] sm:$0xff] %v1023
  %1068 = vst [vmem:[%s8 + $0x38] sm:$0xff] %v1026
  %1069 = vst [vmem:[%s8 + $0x40] sm:$0xff] %v1031
  %1070 = vst [vmem:[%s8 + $0x48] sm:$0xff] %v1034
  %1071 = vst [vmem:[%s8 + $0x50] sm:$0xff] %v1039
  %1072 = vst [vmem:[%s8 + $0x58] sm:$0xff] %v1042
  %1073 = vst [vmem:[%s8 + $0x60] sm:$0xff] %v1047
  %1074 = vst [vmem:[%s8 + $0x68] sm:$0xff] %v1050
  %1075 = vst [vmem:[%s8 + $0x70] sm:$0xff] %v1055
  %1076 = vst [vmem:[%s8 + $0x78] sm:$0xff] %v1058
  %v1077 = vpack.c.bf16 %v1002, %v999
  %v1078 = vpack.c.bf16 %v1010, %v1007
  %v1079 = vpack.c.bf16 %v1018, %v1015
  %v1080 = vpack.c.bf16 %v1026, %v1023
  %v1081 = vpack.c.bf16 %v1034, %v1031
  %v1082 = vpack.c.bf16 %v1042, %v1039
  %v1083 = vpack.c.bf16 %v1050, %v1047
  %v1084 = vpack.c.bf16 %v1058, %v1055
  %v1085 = vld [vmem:[%s4] sm:$0xf]
  %v1086 = vld [vmem:[%s4 + $0x4] sm:$0xf]
  %v1087 = vld [vmem:[%s4 + $0x8] sm:$0xf]
  %v1088 = vld [vmem:[%s4 + $0xc] sm:$0xf]
  %v1089 = vld [vmem:[%s4 + $0x10] sm:$0xf]
  %v1090 = vld [vmem:[%s4 + $0x14] sm:$0xf]
  %v1091 = vld [vmem:[%s4 + $0x18] sm:$0xf]
  %v1092 = vld [vmem:[%s4 + $0x1c] sm:$0xf]
  %v1093 = vld [vmem:[%s4 + $0x20] sm:$0xf]
  %v1094 = vld [vmem:[%s4 + $0x24] sm:$0xf]
  %v1095 = vld [vmem:[%s4 + $0x28] sm:$0xf]
  %v1096 = vld [vmem:[%s4 + $0x2c] sm:$0xf]
  %v1097 = vld [vmem:[%s4 + $0x30] sm:$0xf]
  %v1098 = vld [vmem:[%s4 + $0x34] sm:$0xf]
  %v1099 = vld [vmem:[%s4 + $0x38] sm:$0xf]
  %v1100 = vld [vmem:[%s4 + $0x3c] sm:$0xf]
  %v1117 = vunpack.c.l.b16 %v1085
  %v1118 = vunpack.c.l.b16 %v1086
  %v1119 = vunpack.c.l.b16 %v1087
  %v1120 = vunpack.c.l.b16 %v1088
  %v1121 = vunpack.c.l.b16 %v1089
  %v1122 = vunpack.c.l.b16 %v1090
  %v1123 = vunpack.c.l.b16 %v1091
  %v1124 = vunpack.c.l.b16 %v1092
  %v1125 = vunpack.c.l.b16 %v1093
  %v1126 = vunpack.c.l.b16 %v1094
  %v1127 = vunpack.c.l.b16 %v1095
  %v1128 = vunpack.c.l.b16 %v1096
  %v1129 = vunpack.c.l.b16 %v1097
  %v1130 = vunpack.c.l.b16 %v1098
  %v1131 = vunpack.c.l.b16 %v1099
  %v1132 = vunpack.c.l.b16 %v1100
  %v1133 = vpack.c.b16 %v1118, %v1117
  %v1134 = vpack.c.b16 %v1120, %v1119
  %v1135 = vpack.c.b16 %v1122, %v1121
  %v1136 = vpack.c.b16 %v1124, %v1123
  %v1137 = vpack.c.b16 %v1126, %v1125
  %v1138 = vpack.c.b16 %v1128, %v1127
  %v1139 = vpack.c.b16 %v1130, %v1129
  %v1140 = vpack.c.b16 %v1132, %v1131
  %1149 = vmatprep.subr.bf16.mxu0 0
  %1150 = vmatpush1.bf16.msra.mxu0 %v1133
  %1151 = vmatprep.subr.bf16.mxu0 0
  %1152 = vmatpush1.bf16.msra.mxu0 %v1134
  %1153 = vmatprep.subr.bf16.mxu0 0
  %1154 = vmatpush1.bf16.msra.mxu0 %v1135
  %1155 = vmatprep.subr.bf16.mxu0 0
  %1156 = vmatpush1.bf16.msra.mxu0 %v1136
  %1157 = vmatprep.subr.bf16.mxu0 0
  %1158 = vmatpush1.bf16.msra.mxu0 %v1137
  %1159 = vmatprep.subr.bf16.mxu0 0
  %1160 = vmatpush1.bf16.msra.mxu0 %v1138
  %1161 = vmatprep.subr.bf16.mxu0 0
  %1162 = vmatpush1.bf16.msra.mxu0 %v1139
  %1163 = vmatprep.subr.bf16.mxu0 0
  %1164 = vmatpush1.bf16.msra.mxu0 %v1140
  %1165 = vmatprep.subr.bf16.mxu0 0
  %1166 = vmatpush1.bf16.msra.mxu0 0
  %1167 = vmatprep.subr.bf16.mxu0 0
  %1168 = vmatpush1.bf16.msra.mxu0 0
  %1169 = vmatprep.subr.bf16.mxu0 0
  %1170 = vmatpush1.bf16.msra.mxu0 0
  %1171 = vmatprep.subr.bf16.mxu0 0
  %1172 = vmatpush1.bf16.msra.mxu0 0
  %1173 = vmatprep.subr.bf16.mxu0 0
  %1174 = vmatpush1.bf16.msra.mxu0 0
  %1175 = vmatprep.subr.bf16.mxu0 0
  %1176 = vmatpush1.bf16.msra.mxu0 0
  %1177 = vmatprep.subr.bf16.mxu0 0
  %1178 = vmatpush1.bf16.msra.mxu0 0
  %1179 = vmatprep.subr.bf16.mxu0 0
  %1180 = vmatpush1.bf16.msra.mxu0 0
  %1181 = vmatprep.mubr.bf16.mxu0 0
  %1182 = vmatmul.mubr.bf16.gmra.mrb[0].mxu0 %v1077
  %v1183 = vpop.f32.mrb[0].mxu0
  %v1184 = vadd.f32 0.0, %v1183
  %v1185 = vpop.f32.mrb[0].mxu0
  %v1186 = vpop.f32.mrb[0].mxu0
  %v1187 = vadd.f32 0.0, %v1186
  %v1188 = vpop.f32.mrb[0].mxu0
  %1189 = vmatprep.mubr.bf16.mxu0 0
  %1190 = vmatmul.mubr.bf16.gmra.mrb[0].mxu0 %v1078
  %v1191 = vpop.f32.mrb[0].mxu0
  %v1192 = vadd.f32 0.0, %v1191
  %v1193 = vpop.f32.mrb[0].mxu0
  %v1194 = vpop.f32.mrb[0].mxu0
  %v1195 = vadd.f32 0.0, %v1194
  %v1196 = vpop.f32.mrb[0].mxu0
  %1197 = vmatprep.mubr.bf16.mxu0 0
  %1198 = vmatmul.mubr.bf16.gmra.mrb[0].mxu0 %v1079
  %v1199 = vpop.f32.mrb[0].mxu0
  %v1200 = vadd.f32 0.0, %v1199
  %v1201 = vpop.f32.mrb[0].mxu0
  %v1202 = vpop.f32.mrb[0].mxu0
  %v1203 = vadd.f32 0.0, %v1202
  %v1204 = vpop.f32.mrb[0].mxu0
  %1205 = vmatprep.mubr.bf16.mxu0 0
  %1206 = vmatmul.mubr.bf16.gmra.mrb[0].mxu0 %v1080
  %v1207 = vpop.f32.mrb[0].mxu0
  %v1208 = vadd.f32 0.0, %v1207
  %v1209 = vpop.f32.mrb[0].mxu0
  %v1210 = vpop.f32.mrb[0].mxu0
  %v1211 = vadd.f32 0.0, %v1210
  %v1212 = vpop.f32.mrb[0].mxu0
  %1213 = vmatprep.mubr.bf16.mxu0 0
  %1214 = vmatmul.mubr.bf16.gmra.mrb[0].mxu0 %v1081
  %v1215 = vpop.f32.mrb[0].mxu0
  %v1216 = vadd.f32 0.0, %v1215
  %v1217 = vpop.f32.mrb[0].mxu0
  %v1218 = vpop.f32.mrb[0].mxu0
  %v1219 = vadd.f32 0.0, %v1218
  %v1220 = vpop.f32.mrb[0].mxu0
  %1221 = vmatprep.mubr.bf16.mxu0 0
  %1222 = vmatmul.mubr.bf16.gmra.mrb[0].mxu0 %v1082
  %v1223 = vpop.f32.mrb[0].mxu0
  %v1224 = vadd.f32 0.0, %v1223
  %v1225 = vpop.f32.mrb[0].mxu0
  %v1226 = vpop.f32.mrb[0].mxu0
  %v1227 = vadd.f32 0.0, %v1226
  %v1228 = vpop.f32.mrb[0].mxu0
  %1229 = vmatprep.mubr.bf16.mxu0 0
  %1230 = vmatmul.mubr.bf16.gmra.mrb[0].mxu0 %v1083
  %v1231 = vpop.f32.mrb[0].mxu0
  %v1232 = vadd.f32 0.0, %v1231
  %v1233 = vpop.f32.mrb[0].mxu0
  %v1234 = vpop.f32.mrb[0].mxu0
  %v1235 = vadd.f32 0.0, %v1234
  %v1236 = vpop.f32.mrb[0].mxu0
  %1237 = vmatprep.mubr.bf16.mxu0 0
  %1238 = vmatmul.mubr.bf16.gmra.mrb[0].mxu0 %v1084
  %v1239 = vpop.f32.mrb[0].mxu0
  %v1240 = vadd.f32 0.0, %v1239
  %v1241 = vpop.f32.mrb[0].mxu0
  %v1242 = vpop.f32.mrb[0].mxu0
  %v1243 = vadd.f32 0.0, %v1242
  %v1244 = vpop.f32.mrb[0].mxu0
  %1245 = vdwg.mxu0
  %v1246 = vsel %vm402, 1.0, %v1184
  %v1247 = vsel %vm402, 1.0, %v1187
  %v1248 = vsel %vm402, 1.0, %v1192
  %v1249 = vsel %vm402, 1.0, %v1195
  %v1250 = vsel %vm402, 1.0, %v1200
  %v1251 = vsel %vm402, 1.0, %v1203
  %v1252 = vsel %vm402, 1.0, %v1208
  %v1253 = vsel %vm402, 1.0, %v1211
  %v1254 = vsel %vm402, 1.0, %v1216
  %v1255 = vsel %vm402, 1.0, %v1219
  %v1256 = vsel %vm402, 1.0, %v1224
  %v1257 = vsel %vm402, 1.0, %v1227
  %v1258 = vsel %vm402, 1.0, %v1232
  %v1259 = vsel %vm402, 1.0, %v1235
  %v1260 = vsel %vm402, 1.0, %v1240
  %v1261 = vsel %vm402, 1.0, %v1243
  %v1262 = vpack.c.bf16 %v1247, %v1246
  %v1263 = vpack.c.bf16 %v1249, %v1248
  %v1264 = vpack.c.bf16 %v1251, %v1250
  %v1265 = vpack.c.bf16 %v1253, %v1252
  %v1266 = vpack.c.bf16 %v1255, %v1254
  %v1267 = vpack.c.bf16 %v1257, %v1256
  %v1268 = vpack.c.bf16 %v1259, %v1258
  %v1269 = vpack.c.bf16 %v1261, %v1260
  %1270 = vmatprep.subr.bf16.mxu0 0
  %1271 = vmatpush1.bf16.msra.mxu0 %v1262
  %1272 = vmatprep.subr.bf16.mxu0 0
  %1273 = vmatpush1.bf16.msra.mxu0 %v1263
  %1274 = vmatprep.subr.bf16.mxu0 0
  %1275 = vmatpush1.bf16.msra.mxu0 %v1264
  %1276 = vmatprep.subr.bf16.mxu0 0
  %1277 = vmatpush1.bf16.msra.mxu0 %v1265
  %1278 = vmatprep.subr.bf16.mxu0 0
  %1279 = vmatpush1.bf16.msra.mxu0 %v1266
  %1280 = vmatprep.subr.bf16.mxu0 0
  %1281 = vmatpush1.bf16.msra.mxu0 %v1267
  %1282 = vmatprep.subr.bf16.mxu0 0
  %1283 = vmatpush1.bf16.msra.mxu0 %v1268
  %1284 = vmatprep.subr.bf16.mxu0 0
  %1285 = vmatpush1.bf16.msra.mxu0 %v1269
  %1286 = vmatprep.subr.bf16.mxu0 0
  %1287 = vmatpush1.bf16.msra.mxu0 0
  %1288 = vmatprep.subr.bf16.mxu0 0
  %1289 = vmatpush1.bf16.msra.mxu0 0
  %1290 = vmatprep.subr.bf16.mxu0 0
  %1291 = vmatpush1.bf16.msra.mxu0 0
  %1292 = vmatprep.subr.bf16.mxu0 0
  %1293 = vmatpush1.bf16.msra.mxu0 0
  %1294 = vmatprep.subr.bf16.mxu0 0
  %1295 = vmatpush1.bf16.msra.mxu0 0
  %1296 = vmatprep.subr.bf16.mxu0 0
  %1297 = vmatpush1.bf16.msra.mxu0 0
  %1298 = vmatprep.subr.bf16.mxu0 0
  %1299 = vmatpush1.bf16.msra.mxu0 0
  %1300 = vmatprep.subr.bf16.mxu0 0
  %1301 = vmatpush1.bf16.msra.mxu0 0
  %1302 = vmatprep.mubr.bf16.mxu0 0
  %1303 = vmatmul.mubr.bf16.gmra.mrb[0].mxu0 %v563
  %v1304 = vpop.f32.mrb[0].mxu0
  %v1305 = vadd.f32 0.0, %v1304
  %v1306 = vpop.f32.mrb[0].mxu0
  %v1307 = vpop.f32.mrb[0].mxu0
  %v1308 = vadd.f32 0.0, %v1307
  %v1309 = vpop.f32.mrb[0].mxu0
  %1310 = vmatprep.mubr.bf16.mxu0 0
  %1311 = vmatmul.mubr.bf16.gmra.mrb[0].mxu0 %v564
  %v1312 = vpop.f32.mrb[0].mxu0
  %v1313 = vadd.f32 0.0, %v1312
  %v1314 = vpop.f32.mrb[0].mxu0
  %v1315 = vpop.f32.mrb[0].mxu0
  %v1316 = vadd.f32 0.0, %v1315
  %v1317 = vpop.f32.mrb[0].mxu0
  %1318 = vmatprep.mubr.bf16.mxu0 0
  %1319 = vmatmul.mubr.bf16.gmra.mrb[0].mxu0 %v565
  %v1320 = vpop.f32.mrb[0].mxu0
  %v1321 = vadd.f32 0.0, %v1320
  %v1322 = vpop.f32.mrb[0].mxu0
  %v1323 = vpop.f32.mrb[0].mxu0
  %v1324 = vadd.f32 0.0, %v1323
  %v1325 = vpop.f32.mrb[0].mxu0
  %1326 = vmatprep.mubr.bf16.mxu0 0
  %1327 = vmatmul.mubr.bf16.gmra.mrb[0].mxu0 %v566
  %v1328 = vpop.f32.mrb[0].mxu0
  %v1329 = vadd.f32 0.0, %v1328
  %v1330 = vpop.f32.mrb[0].mxu0
  %v1331 = vpop.f32.mrb[0].mxu0
  %v1332 = vadd.f32 0.0, %v1331
  %v1333 = vpop.f32.mrb[0].mxu0
  %1334 = vmatprep.mubr.bf16.mxu0 0
  %1335 = vmatmul.mubr.bf16.gmra.mrb[0].mxu0 %v567
  %v1336 = vpop.f32.mrb[0].mxu0
  %v1337 = vadd.f32 0.0, %v1336
  %v1338 = vpop.f32.mrb[0].mxu0
  %v1339 = vpop.f32.mrb[0].mxu0
  %v1340 = vadd.f32 0.0, %v1339
  %v1341 = vpop.f32.mrb[0].mxu0
  %1342 = vmatprep.mubr.bf16.mxu0 0
  %1343 = vmatmul.mubr.bf16.gmra.mrb[0].mxu0 %v568
  %v1344 = vpop.f32.mrb[0].mxu0
  %v1345 = vadd.f32 0.0, %v1344
  %v1346 = vpop.f32.mrb[0].mxu0
  %v1347 = vpop.f32.mrb[0].mxu0
  %v1348 = vadd.f32 0.0, %v1347
  %v1349 = vpop.f32.mrb[0].mxu0
  %1350 = vmatprep.mubr.bf16.mxu0 0
  %1351 = vmatmul.mubr.bf16.gmra.mrb[0].mxu0 %v569
  %v1352 = vpop.f32.mrb[0].mxu0
  %v1353 = vadd.f32 0.0, %v1352
  %v1354 = vpop.f32.mrb[0].mxu0
  %v1355 = vpop.f32.mrb[0].mxu0
  %v1356 = vadd.f32 0.0, %v1355
  %v1357 = vpop.f32.mrb[0].mxu0
  %1358 = vmatprep.mubr.bf16.mxu0 0
  %1359 = vmatmul.mubr.bf16.gmra.mrb[0].mxu0 %v570
  %v1360 = vpop.f32.mrb[0].mxu0
  %v1361 = vadd.f32 0.0, %v1360
  %v1362 = vpop.f32.mrb[0].mxu0
  %v1363 = vpop.f32.mrb[0].mxu0
  %v1364 = vadd.f32 0.0, %v1363
  %v1365 = vpop.f32.mrb[0].mxu0
  %1366 = vdwg.mxu0
  %v1367 = vmul.f32 %v1305, %v719
  %v1368 = vmul.f32 %v1308, %v724
  %v1369 = vmul.f32 %v1313, %v729
  %v1370 = vmul.f32 %v1316, %v734
  %v1371 = vmul.f32 %v1321, %v739
  %v1372 = vmul.f32 %v1324, %v744
  %v1373 = vmul.f32 %v1329, %v749
  %v1374 = vmul.f32 %v1332, %v754
  %v1375 = vmul.f32 %v1337, %v759
  %v1376 = vmul.f32 %v1340, %v764
  %v1377 = vmul.f32 %v1345, %v769
  %v1378 = vmul.f32 %v1348, %v774
  %v1379 = vmul.f32 %v1353, %v779
  %v1380 = vmul.f32 %v1356, %v784
  %v1381 = vmul.f32 %v1361, %v789
  %v1382 = vmul.f32 %v1364, %v794
  %vm1383 = vcmp.gt.f32.partialorder %v1367, 0.0
  %vm1384 = vcmp.gt.f32.partialorder %v1368, 0.0
  %vm1385 = vcmp.gt.f32.partialorder %v1369, 0.0
  %vm1386 = vcmp.gt.f32.partialorder %v1370, 0.0
  %vm1387 = vcmp.gt.f32.partialorder %v1371, 0.0
  %vm1388 = vcmp.gt.f32.partialorder %v1372, 0.0
  %vm1389 = vcmp.gt.f32.partialorder %v1373, 0.0
  %vm1390 = vcmp.gt.f32.partialorder %v1374, 0.0
  %vm1391 = vcmp.gt.f32.partialorder %v1375, 0.0
  %vm1392 = vcmp.gt.f32.partialorder %v1376, 0.0
  %vm1393 = vcmp.gt.f32.partialorder %v1377, 0.0
  %vm1394 = vcmp.gt.f32.partialorder %v1378, 0.0
  %vm1395 = vcmp.gt.f32.partialorder %v1379, 0.0
  %vm1396 = vcmp.gt.f32.partialorder %v1380, 0.0
  %vm1397 = vcmp.gt.f32.partialorder %v1381, 0.0
  %vm1398 = vcmp.gt.f32.partialorder %v1382, 0.0
  %v1399 = vmul.f32 %v1367, 1.442695
  %v1400 = vpow.pop %v1399
  %v1401 = vmul.f32 %v1368, 1.442695
  %v1402 = vpow.pop %v1401
  %v1403 = vmul.f32 %v1369, 1.442695
  %v1404 = vpow.pop %v1403
  %v1405 = vmul.f32 %v1370, 1.442695
  %v1406 = vpow.pop %v1405
  %v1407 = vmul.f32 %v1371, 1.442695
  %v1408 = vpow.pop %v1407
  %v1409 = vmul.f32 %v1372, 1.442695
  %v1410 = vpow.pop %v1409
  %v1411 = vmul.f32 %v1373, 1.442695
  %v1412 = vpow.pop %v1411
  %v1413 = vmul.f32 %v1374, 1.442695
  %v1414 = vpow.pop %v1413
  %v1415 = vmul.f32 %v1375, 1.442695
  %v1416 = vpow.pop %v1415
  %v1417 = vmul.f32 %v1376, 1.442695
  %v1418 = vpow.pop %v1417
  %v1419 = vmul.f32 %v1377, 1.442695
  %v1420 = vpow.pop %v1419
  %v1421 = vmul.f32 %v1378, 1.442695
  %v1422 = vpow.pop %v1421
  %v1423 = vmul.f32 %v1379, 1.442695
  %v1424 = vpow.pop %v1423
  %v1425 = vmul.f32 %v1380, 1.442695
  %v1426 = vpow.pop %v1425
  %v1427 = vmul.f32 %v1381, 1.442695
  %v1428 = vpow.pop %v1427
  %v1429 = vmul.f32 %v1382, 1.442695
  %v1430 = vpow.pop %v1429
  %v1431 = vsub.f32 %v1400, 1.0
  %v1432 = vsub.f32 %v1402, 1.0
  %v1433 = vsub.f32 %v1404, 1.0
  %v1434 = vsub.f32 %v1406, 1.0
  %v1435 = vsub.f32 %v1408, 1.0
  %v1436 = vsub.f32 %v1410, 1.0
  %v1437 = vsub.f32 %v1412, 1.0
  %v1438 = vsub.f32 %v1414, 1.0
  %v1439 = vsub.f32 %v1416, 1.0
  %v1440 = vsub.f32 %v1418, 1.0
  %v1441 = vsub.f32 %v1420, 1.0
  %v1442 = vsub.f32 %v1422, 1.0
  %v1443 = vsub.f32 %v1424, 1.0
  %v1444 = vsub.f32 %v1426, 1.0
  %v1445 = vsub.f32 %v1428, 1.0
  %v1446 = vsub.f32 %v1430, 1.0
  %v1447 = vsel %vm1383, %v1367, %v1431
  %v1448 = vsel %vm1384, %v1368, %v1432
  %v1449 = vsel %vm1385, %v1369, %v1433
  %v1450 = vsel %vm1386, %v1370, %v1434
  %v1451 = vsel %vm1387, %v1371, %v1435
  %v1452 = vsel %vm1388, %v1372, %v1436
  %v1453 = vsel %vm1389, %v1373, %v1437
  %v1454 = vsel %vm1390, %v1374, %v1438
  %v1455 = vsel %vm1391, %v1375, %v1439
  %v1456 = vsel %vm1392, %v1376, %v1440
  %v1457 = vsel %vm1393, %v1377, %v1441
  %v1458 = vsel %vm1394, %v1378, %v1442
  %v1459 = vsel %vm1395, %v1379, %v1443
  %v1460 = vsel %vm1396, %v1380, %v1444
  %v1461 = vsel %vm1397, %v1381, %v1445
  %v1462 = vsel %vm1398, %v1382, %v1446
  %v1463 = vpack.c.bf16 %v1448, %v1447
  %v1464 = vpack.c.bf16 %v1450, %v1449
  %v1465 = vpack.c.bf16 %v1452, %v1451
  %v1466 = vpack.c.bf16 %v1454, %v1453
  %v1467 = vpack.c.bf16 %v1456, %v1455
  %v1468 = vpack.c.bf16 %v1458, %v1457
  %v1469 = vpack.c.bf16 %v1460, %v1459
  %v1470 = vpack.c.bf16 %v1462, %v1461
  %v1471 = vld [vmem:[%s5] sm:$0xf]
  %v1472 = vld [vmem:[%s5 + $0x4] sm:$0xf]
  %v1473 = vld [vmem:[%s5 + $0x8] sm:$0xf]
  %v1474 = vld [vmem:[%s5 + $0xc] sm:$0xf]
  %v1475 = vld [vmem:[%s5 + $0x10] sm:$0xf]
  %v1476 = vld [vmem:[%s5 + $0x14] sm:$0xf]
  %v1477 = vld [vmem:[%s5 + $0x18] sm:$0xf]
  %v1478 = vld [vmem:[%s5 + $0x1c] sm:$0xf]
  %v1479 = vld [vmem:[%s5 + $0x20] sm:$0xf]
  %v1480 = vld [vmem:[%s5 + $0x24] sm:$0xf]
  %v1481 = vld [vmem:[%s5 + $0x28] sm:$0xf]
  %v1482 = vld [vmem:[%s5 + $0x2c] sm:$0xf]
  %v1483 = vld [vmem:[%s5 + $0x30] sm:$0xf]
  %v1484 = vld [vmem:[%s5 + $0x34] sm:$0xf]
  %v1485 = vld [vmem:[%s5 + $0x38] sm:$0xf]
  %v1486 = vld [vmem:[%s5 + $0x3c] sm:$0xf]
  %v1503 = vunpack.c.l.b16 %v1471
  %v1504 = vunpack.c.l.b16 %v1472
  %v1505 = vunpack.c.l.b16 %v1473
  %v1506 = vunpack.c.l.b16 %v1474
  %v1507 = vunpack.c.l.b16 %v1475
  %v1508 = vunpack.c.l.b16 %v1476
  %v1509 = vunpack.c.l.b16 %v1477
  %v1510 = vunpack.c.l.b16 %v1478
  %v1511 = vunpack.c.l.b16 %v1479
  %v1512 = vunpack.c.l.b16 %v1480
  %v1513 = vunpack.c.l.b16 %v1481
  %v1514 = vunpack.c.l.b16 %v1482
  %v1515 = vunpack.c.l.b16 %v1483
  %v1516 = vunpack.c.l.b16 %v1484
  %v1517 = vunpack.c.l.b16 %v1485
  %v1518 = vunpack.c.l.b16 %v1486
  %v1519 = vpack.c.b16 %v1504, %v1503
  %v1520 = vpack.c.b16 %v1506, %v1505
  %v1521 = vpack.c.b16 %v1508, %v1507
  %v1522 = vpack.c.b16 %v1510, %v1509
  %v1523 = vpack.c.b16 %v1512, %v1511
  %v1524 = vpack.c.b16 %v1514, %v1513
  %v1525 = vpack.c.b16 %v1516, %v1515
  %v1526 = vpack.c.b16 %v1518, %v1517
  %1535 = vmatprep.subr.bf16.mxu0 0
  %1536 = vmatpush1.bf16.msra.mxu0 %v1519
  %1537 = vmatprep.subr.bf16.mxu0 0
  %1538 = vmatpush1.bf16.msra.mxu0 %v1520
  %1539 = vmatprep.subr.bf16.mxu0 0
  %1540 = vmatpush1.bf16.msra.mxu0 %v1521
  %1541 = vmatprep.subr.bf16.mxu0 0
  %1542 = vmatpush1.bf16.msra.mxu0 %v1522
  %1543 = vmatprep.subr.bf16.mxu0 0
  %1544 = vmatpush1.bf16.msra.mxu0 %v1523
  %1545 = vmatprep.subr.bf16.mxu0 0
  %1546 = vmatpush1.bf16.msra.mxu0 %v1524
  %1547 = vmatprep.subr.bf16.mxu0 0
  %1548 = vmatpush1.bf16.msra.mxu0 %v1525
  %1549 = vmatprep.subr.bf16.mxu0 0
  %1550 = vmatpush1.bf16.msra.mxu0 %v1526
  %1551 = vmatprep.subr.bf16.mxu0 0
  %1552 = vmatpush1.bf16.msra.mxu0 0
  %1553 = vmatprep.subr.bf16.mxu0 0
  %1554 = vmatpush1.bf16.msra.mxu0 0
  %1555 = vmatprep.subr.bf16.mxu0 0
  %1556 = vmatpush1.bf16.msra.mxu0 0
  %1557 = vmatprep.subr.bf16.mxu0 0
  %1558 = vmatpush1.bf16.msra.mxu0 0
  %1559 = vmatprep.subr.bf16.mxu0 0
  %1560 = vmatpush1.bf16.msra.mxu0 0
  %1561 = vmatprep.subr.bf16.mxu0 0
  %1562 = vmatpush1.bf16.msra.mxu0 0
  %1563 = vmatprep.subr.bf16.mxu0 0
  %1564 = vmatpush1.bf16.msra.mxu0 0
  %1565 = vmatprep.subr.bf16.mxu0 0
  %1566 = vmatpush1.bf16.msra.mxu0 0
  %1567 = vmatprep.mubr.bf16.mxu0 0
  %1568 = vmatmul.mubr.bf16.gmra.mrb[0].mxu0 %v1463
  %v1569 = vpop.f32.mrb[0].mxu0
  %v1570 = vadd.f32 0.0, %v1569
  %v1571 = vpop.f32.mrb[0].mxu0
  %v1572 = vpop.f32.mrb[0].mxu0
  %v1573 = vadd.f32 0.0, %v1572
  %v1574 = vpop.f32.mrb[0].mxu0
  %1575 = vmatprep.mubr.bf16.mxu0 0
  %1576 = vmatmul.mubr.bf16.gmra.mrb[0].mxu0 %v1464
  %v1577 = vpop.f32.mrb[0].mxu0
  %v1578 = vadd.f32 0.0, %v1577
  %v1579 = vpop.f32.mrb[0].mxu0
  %v1580 = vpop.f32.mrb[0].mxu0
  %v1581 = vadd.f32 0.0, %v1580
  %v1582 = vpop.f32.mrb[0].mxu0
  %1583 = vmatprep.mubr.bf16.mxu0 0
  %1584 = vmatmul.mubr.bf16.gmra.mrb[0].mxu0 %v1465
  %v1585 = vpop.f32.mrb[0].mxu0
  %v1586 = vadd.f32 0.0, %v1585
  %v1587 = vpop.f32.mrb[0].mxu0
  %v1588 = vpop.f32.mrb[0].mxu0
  %v1589 = vadd.f32 0.0, %v1588
  %v1590 = vpop.f32.mrb[0].mxu0
  %1591 = vmatprep.mubr.bf16.mxu0 0
  %1592 = vmatmul.mubr.bf16.gmra.mrb[0].mxu0 %v1466
  %v1593 = vpop.f32.mrb[0].mxu0
  %v1594 = vadd.f32 0.0, %v1593
  %v1595 = vpop.f32.mrb[0].mxu0
  %v1596 = vpop.f32.mrb[0].mxu0
  %v1597 = vadd.f32 0.0, %v1596
  %v1598 = vpop.f32.mrb[0].mxu0
  %1599 = vmatprep.mubr.bf16.mxu0 0
  %1600 = vmatmul.mubr.bf16.gmra.mrb[0].mxu0 %v1467
  %v1601 = vpop.f32.mrb[0].mxu0
  %v1602 = vadd.f32 0.0, %v1601
  %v1603 = vpop.f32.mrb[0].mxu0
  %v1604 = vpop.f32.mrb[0].mxu0
  %v1605 = vadd.f32 0.0, %v1604
  %v1606 = vpop.f32.mrb[0].mxu0
  %1607 = vmatprep.mubr.bf16.mxu0 0
  %1608 = vmatmul.mubr.bf16.gmra.mrb[0].mxu0 %v1468
  %v1609 = vpop.f32.mrb[0].mxu0
  %v1610 = vadd.f32 0.0, %v1609
  %v1611 = vpop.f32.mrb[0].mxu0
  %v1612 = vpop.f32.mrb[0].mxu0
  %v1613 = vadd.f32 0.0, %v1612
  %v1614 = vpop.f32.mrb[0].mxu0
  %1615 = vmatprep.mubr.bf16.mxu0 0
  %1616 = vmatmul.mubr.bf16.gmra.mrb[0].mxu0 %v1469
  %v1617 = vpop.f32.mrb[0].mxu0
  %v1618 = vadd.f32 0.0, %v1617
  %v1619 = vpop.f32.mrb[0].mxu0
  %v1620 = vpop.f32.mrb[0].mxu0
  %v1621 = vadd.f32 0.0, %v1620
  %v1622 = vpop.f32.mrb[0].mxu0
  %1623 = vmatprep.mubr.bf16.mxu0 0
  %1624 = vmatmul.mubr.bf16.gmra.mrb[0].mxu0 %v1470
  %v1625 = vpop.f32.mrb[0].mxu0
  %v1626 = vadd.f32 0.0, %v1625
  %v1627 = vpop.f32.mrb[0].mxu0
  %v1628 = vpop.f32.mrb[0].mxu0
  %v1629 = vadd.f32 0.0, %v1628
  %v1630 = vpop.f32.mrb[0].mxu0
  %1631 = vdwg.mxu0
  %1632 = vst [vmem:[%s9] sm:$0xff] %v1570
  %1633 = vst [vmem:[%s9 + $0x8] sm:$0xff] %v1573
  %1634 = vst [vmem:[%s9 + $0x10] sm:$0xff] %v1578
  %1635 = vst [vmem:[%s9 + $0x18] sm:$0xff] %v1581
  %1636 = vst [vmem:[%s9 + $0x20] sm:$0xff] %v1586
  %1637 = vst [vmem:[%s9 + $0x28] sm:$0xff] %v1589
  %1638 = vst [vmem:[%s9 + $0x30] sm:$0xff] %v1594
  %1639 = vst [vmem:[%s9 + $0x38] sm:$0xff] %v1597
  %1640 = vst [vmem:[%s9 + $0x40] sm:$0xff] %v1602
  %1641 = vst [vmem:[%s9 + $0x48] sm:$0xff] %v1605
  %1642 = vst [vmem:[%s9 + $0x50] sm:$0xff] %v1610
  %1643 = vst [vmem:[%s9 + $0x58] sm:$0xff] %v1613
  %1644 = vst [vmem:[%s9 + $0x60] sm:$0xff] %v1618
  %1645 = vst [vmem:[%s9 + $0x68] sm:$0xff] %v1621
  %1646 = vst [vmem:[%s9 + $0x70] sm:$0xff] %v1626
  %1647 = vst [vmem:[%s9 + $0x78] sm:$0xff] %v1629
  // Predicated region
  $region34: #{stahd_forward.1} parent=0 // pred_check
    _
  $region35: #{stahd_forward.1} parent=0 // pred_check_branch
    %1649 = sbr.rel (0) target = $region37
  $region36: #{stahd_forward.1} parent=0 // pred_region
    _
  $region37: #{stahd_forward.1} parent=0 // pred_fallthru
    _
  // Predicated region
  $region38: #{stahd_forward.1} parent=0 // pred_check
    _
  $region39: #{stahd_forward.1} parent=0 // pred_check_branch
    %1651 = sbr.rel (0) target = $region41
  $region40: #{stahd_forward.1} parent=0 // pred_region
    _
  $region41: #{stahd_forward.1} parent=0 // pred_fallthru
    _
  // Predicated region
  $region42: #{stahd_forward.1} parent=0 // pred_check
    _
  $region43: #{stahd_forward.1} parent=0 // pred_check_branch
    %1653 = sbr.rel (0) target = $region45
  $region44: #{stahd_forward.1} parent=0 // pred_region
    _
  $region45: #{stahd_forward.1} parent=0 // pred_fallthru
    _
  // Predicated region
  $region46: #{stahd_forward.1} parent=0 // pred_check
    _
  $region47: #{stahd_forward.1} parent=0 // pred_check_branch
    %1655 = sbr.rel (0) target = $region49
  $region48: #{stahd_forward.1} parent=0 // pred_region
    _
  $region49: #{stahd_forward.1} parent=0 // pred_fallthru
    _

</llo_original>
